<compile_context>
chip_gen: v7x
topology: tpu7x:2x2x1
jax: 0.10.0
libtpu: 0.0.40
codegen_flags: <defaults>
</compile_context>

<pallas_src>
import math

import jax
import jax.numpy as jnp
from jax import lax
from jax.experimental import pallas as pl
from jax.experimental.pallas import tpu as pltpu

SQRT2 = math.sqrt(2.0)


# ---------------------------------------------------------------------------
# GELU (exact erf form, matching nn.GELU() default)
# ---------------------------------------------------------------------------
def _erf_poly(x):
    """Abramowitz & Stegun 7.1.26 erf approximation, max abs error 1.5e-7."""
    ax = jnp.abs(x)
    t = 1.0 / (1.0 + 0.3275911 * ax)
    poly = t * (0.254829592
                + t * (-0.284496736
                       + t * (1.421413741
                              + t * (-1.453152027 + t * 1.061405429))))
    y = 1.0 - poly * jnp.exp(-ax * ax)
    return jnp.where(x >= 0.0, y, -y)


def _gelu_kernel(x):                    # used inside the Pallas kernel
    return 0.5 * x * (1.0 + _erf_poly(x / SQRT2))


def _gelu_exact(x):                     # used by the host-side reference
    return 0.5 * x * (1.0 + lax.erf(x / SQRT2))


# ---------------------------------------------------------------------------
# Module config / parameters (deterministic synthetic init, PyTorch layouts)
# ---------------------------------------------------------------------------
def block_channels(nb_out_feats, nb_blocks):
    chans = []
    nb_feats = nb_out_feats * 2 ** (nb_blocks - 1)
    for block in range(nb_blocks):
        out = nb_feats // 2 if nb_feats // 2 > nb_out_feats else nb_out_feats
        chans.append((nb_feats, out))
        if block != nb_blocks - 1:
            nb_feats = nb_feats // 2
    assert nb_feats == nb_out_feats
    return chans


def make_config(gen_features, nb_out_feats, nb_blocks, img_dims, nb_streams, k=2):
    spatial_init = tuple(int(d // 2 ** nb_blocks) for d in img_dims)
    init_conv_feats = nb_out_feats * 2 ** (nb_blocks - 1)
    linear_out_feats = int(spatial_init[0] * spatial_init[1] * init_conv_feats)
    return dict(
        gen_features=gen_features,
        nb_out_feats=nb_out_feats,
        nb_blocks=nb_blocks,
        nb_streams=nb_streams,
        k=k,
        spatial_init=spatial_init,
        init_conv_feats=init_conv_feats,
        linear_out_feats=linear_out_feats,
        channels=block_channels(nb_out_feats, nb_blocks),
    )


def init_params(key, cfg):
    def uniform(key, shape, fan_in):
        bound = 1.0 / math.sqrt(fan_in)
        return jax.random.uniform(key, shape, jnp.float32, -bound, bound)

    F, L, k = cfg["gen_features"], cfg["linear_out_feats"], cfg["k"]
    n_conv = cfg["nb_streams"] * cfg["nb_blocks"]
    keys = iter(jax.random.split(key, 4 + 2 * n_conv))
    params = dict(
        wm=uniform(next(keys), (F, L), F),
        bm=uniform(next(keys), (L,), F),
        ws=uniform(next(keys), (F, L), F),
        bs=uniform(next(keys), (L,), F),
        streams=[],
    )
    for _ in range(cfg["nb_streams"]):
        stream = []
        for (ci, co) in cfg["channels"]:
            w = uniform(next(keys), (ci, co, k, k), ci * k * k)   # ConvT layout (Ci,Co,k,k)
            b = uniform(next(keys), (co,), ci * k * k)
            stream.append((w, b))
        params["streams"].append(stream)
    return params


# ---------------------------------------------------------------------------
# One-time repack of parameters into the layouts the fused kernel consumes
# ---------------------------------------------------------------------------
def prepare_kernel_params(params, cfg):
    kk = cfg["k"] ** 2
    packed = dict(
        # mean/std linears fused into one (F, 2L) GEMM -> lane width 2L
        w_lin_train=jnp.concatenate([params["wm"], params["ws"]], axis=1),
        b_lin_train=jnp.concatenate([params["bm"], params["bs"]]).reshape(1, -1),
        # eval path only needs the mean branch
        w_lin_eval=params["wm"],
        b_lin_eval=params["bm"].reshape(1, -1),
        conv_w=[],
        conv_b=[],
    )
    for t in range(cfg["nb_blocks"]):
        w_t, b_t = [], []
        for stream in params["streams"]:
            w, b = stream[t]
            ci, co = w.shape[0], w.shape[1]
            # (Ci, Co, k, k) -> (k*k*Co, Ci): rows ordered (kh, kw, co)
            w_t.append(jnp.transpose(w, (2, 3, 1, 0)).reshape(kk * co, ci))
            # conv bias broadcast over (kh, kw): row (khw*Co + co) -> b[co]
            b_t.append(jnp.tile(b, kk).reshape(kk * co, 1))
        packed["conv_w"].append(jnp.stack(w_t))   # (nb_streams, k*k*Co, Ci)
        packed["conv_b"].append(jnp.stack(b_t))   # (nb_streams, k*k*Co, 1)
    return packed


# ---------------------------------------------------------------------------
# Wrapper-side un-scramble of the fused kernel's lane-dense output slab
# ---------------------------------------------------------------------------
def _unscramble(out2d, B, Hs, Ws, Co, k, T):
    """out2d: (k*k*Co, k^(2(T-1)) * B * Hs * Ws)
       dim0 = (kh_T, kw_T, co)
       dim1 = (kh_{T-1}, kw_{T-1}, ..., kh_1, kw_1, b, h0, w0)
       Output pixel H = ((h0*k + kh_1)*k + kh_2)*k ... + kh_T (same for W)."""
    shape = (k, k, Co) + (k, k) * (T - 1) + (B, Hs, Ws)
    y = out2d.reshape(shape)
    kh_ax, kw_ax = {T: 0}, {T: 1}
    for i in range(T - 1):
        kh_ax[T - 1 - i] = 3 + 2 * i
        kw_ax[T - 1 - i] = 4 + 2 * i
    b_ax = 3 + 2 * (T - 1)
    h0_ax, w0_ax = b_ax + 1, b_ax + 2
    perm = ([b_ax, 2, h0_ax] + [kh_ax[j] for j in range(1, T + 1)]
            + [w0_ax] + [kw_ax[j] for j in range(1, T + 1)])
    y = jnp.transpose(y, perm)
    return y.reshape(B, Co, Hs * k ** T, Ws * k ** T)


# ---------------------------------------------------------------------------
# Fused forward: ONE pallas_call covering linear + reparam + all conv blocks
# ---------------------------------------------------------------------------
def forward(packed, x, eps, cfg, training=True):
    # TODO(synk): ConvBlock is not defined in the reference source; assumed to be
    # ConvTranspose2d(k, stride=k, padding=0) + GELU (normalisation=None, no dropout).
    B, F = x.shape
    kk = cfg["k"] ** 2
    T, S = cfg["nb_blocks"], cfg["nb_streams"]
    C0 = cfg["init_conv_feats"]
    Hs, Ws = cfg["spatial_init"]
    S0 = Hs * Ws
    L = cfg["linear_out_feats"]
    chans = cfg["channels"]
    Co_out = chans[-1][1]
    P = [B * S0 * kk ** t for t in range(T)]      # pixel (lane) count entering block t

    if training:
        w_lin, b_lin = packed["w_lin_train"], packed["b_lin_train"]
    else:
        w_lin, b_lin = packed["w_lin_eval"], packed["b_lin_eval"]
    conv_w, conv_b = packed["conv_w"], packed["conv_b"]

    def kernel(*refs):
        it = iter(refs)
        x_ref, wl_ref, bl_ref = next(it), next(it), next(it)
        eps_ref = next(it) if training else None
        wb_refs = [(next(it), next(it)) for _ in range(T)]
        out_ref = next(it)
        h_refs = [next(it) for _ in range(T)]

        # 1) fused linear_mean / linear_std GEMM (+bias, GELU) + reparameterisation
        mm = jnp.dot(x_ref[...], wl_ref[...],
                     preferred_element_type=jnp.float32) + bl_ref[...]
        if training:
            zz = _gelu_kernel(mm[:, :L]) + eps_ref[...] * _gelu_kernel(mm[:, L:])
        else:
            zz = _gelu_kernel(mm)                 # eval: std branch skipped entirely

        # 2) z.view(B, C0, Hs, Ws) -> channels-on-sublanes h0[c, b*S0 + s0]
        #    (static unrolled, VMEM-only scatter: O(B*C0) tiny row copies)
        h0 = h_refs[0]
        for b in range(B):
            for c in range(C0):
                h0[pl.ds(c, 1), pl.ds(b * S0, S0)] = zz[b:b + 1, c * S0:(c + 1) * S0]

        # 3) all ConvTranspose2d(k, s=k, p=0) + GELU blocks; intermediates in VMEM.
        #    y[(kh,kw,co), pix] = W2 @ h + b; depth-to-space = contiguous lane-block
        #    copies (the new (kh,kw) becomes the slowest pixel digit).
        for t in range(T):
            co = chans[t][1]
            w_ref, b_ref = wb_refs[t]
            y = jnp.dot(w_ref[...], h_refs[t][...],
                        preferred_element_type=jnp.float32) + b_ref[...]
            y = _gelu_kernel(y)
            if t < T - 1:
                nxt = h_refs[t + 1]
                for q in range(kk):
                    nxt[:, pl.ds(q * P[t], P[t])] = y[q * co:(q + 1) * co, :]
            else:
                out_ref[...] = y                  # lane-dense (k*k*Co_out, P[T-1]) slab

    lin_cols = w_lin.shape[1]

    def _replicated(shape):                       # same block for every stream
        return pl.BlockSpec(shape, lambda s: (0, 0))

    in_specs = [_replicated((B, F)), _replicated((F, lin_cols)),
                _replicated((1, lin_cols))]
    inputs = [x, w_lin, b_lin]
    if training:
        in_specs.append(_replicated((B, L)))
        inputs.append(eps)
    for t in range(T):
        ci, co = chans[t]
        in_specs.append(pl.BlockSpec((None, kk * co, ci), lambda s: (s, 0, 0)))
        in_specs.append(pl.BlockSpec((None, kk * co, 1), lambda s: (s, 0, 0)))
        inputs += [conv_w[t], conv_b[t]]

    raw = pl.pallas_call(
        kernel,
        out_shape=jax.ShapeDtypeStruct((S, kk * Co_out, P[T - 1]), jnp.float32),
        grid=(S,),
        in_specs=in_specs,
        out_specs=pl.BlockSpec((None, kk * Co_out, P[T - 1]), lambda s: (s, 0, 0)),
        scratch_shapes=[pltpu.VMEM((chans[t][0], P[t]), jnp.float32)
                        for t in range(T)],
        compiler_params=pltpu.CompilerParams(
            dimension_semantics=("parallel",)),   # streams -> both TCs on v7x
    )(*inputs)

    return [_unscramble(raw[s], B, Hs, Ws, Co_out, cfg["k"], T) for s in range(S)]


# ---------------------------------------------------------------------------
# Pure-jnp NCHW reference (mirrors the PyTorch module) for validation
# ---------------------------------------------------------------------------
def reference(params, x, eps, cfg, training=True):
    hp = lax.Precision.HIGHEST
    mean = _gelu_exact(jnp.dot(x, params["wm"], precision=hp) + params["bm"])
    if training:
        std = _gelu_exact(jnp.dot(x, params["ws"], precision=hp) + params["bs"])
        z = eps * std + mean
    else:
        z = mean
    B = x.shape[0]
    z = z.reshape(B, cfg["init_conv_feats"], *cfg["spatial_init"])
    outs = []
    for stream in params["streams"]:
        h = z
        for (w, b) in stream:
            y = jnp.einsum("bihw,iokl->bohkwl", h, w, precision=hp)
            Bb, Co, H, kh, W, kw = y.shape
            y = y.reshape(Bb, Co, H * kh, W * kw) + b[None, :, None, None]
            h = _gelu_exact(y)
        outs.append(h)
    return outs


if __name__ == "__main__":
    # Small config consistent with the module's constraints:
    #   gen_features=32, nb_out_feats=4, nb_blocks=3, img_dims=(16,16),
    #   nb_streams=2 -> linear 32 -> 64, conv streams 16->8->4->4 channels,
    #   spatial 2x2 -> 16x16.  Output: [ (2,4,16,16), (2,4,16,16) ].
    gen_features = 32
    nb_out_feats = 4
    nb_blocks = 3
    img_dims = (16, 16)
    nb_streams = 2
    batch = 2

    cfg = make_config(gen_features, nb_out_feats, nb_blocks, img_dims, nb_streams)

    key = jax.random.PRNGKey(0)
    k_param, k_x, k_eps = jax.random.split(key, 3)
    params = init_params(k_param, cfg)
    packed = prepare_kernel_params(params, cfg)

    x = jax.random.normal(k_x, (batch, gen_features), jnp.float32)
    # torch.randn_like(std) replaced by an explicit deterministic normal draw
    eps = jax.random.normal(k_eps, (batch, cfg["linear_out_feats"]), jnp.float32)

    # training=True (reparameterised) path
    outs = forward(packed, x, eps, cfg, training=True)
    outs = [jax.block_until_ready(o) for o in outs]
    refs = reference(params, x, eps, cfg, training=True)
    assert len(outs) == nb_streams
    for o, r in zip(outs, refs):
        assert o.shape == (batch, nb_out_feats, img_dims[0], img_dims[1]), o.shape
        err = float(jnp.max(jnp.abs(o - r)))
        assert jnp.allclose(o, r, atol=2e-3, rtol=2e-3), err

    # training=False path (std branch is skipped inside the kernel)
    outs_e = forward(packed, x, None, cfg, training=False)
    outs_e = [jax.block_until_ready(o) for o in outs_e]
    refs_e = reference(params, x, eps, cfg, training=False)
    for o, r in zip(outs_e, refs_e):
        err = float(jnp.max(jnp.abs(o - r)))
        assert jnp.allclose(o, r, atol=2e-3, rtol=2e-3), err

    print("KERNEL_OK")
</pallas_src>

<mosaic_0001>
module attributes {stable_mosaic.version = 11 : i64} {
  func.func @kernel(%arg0: i32, %arg1: memref<2x32xf32, #tpu.memory_space<vmem>>, %arg2: memref<32x128xf32, #tpu.memory_space<vmem>>, %arg3: memref<1x128xf32, #tpu.memory_space<vmem>>, %arg4: memref<2x64xf32, #tpu.memory_space<vmem>>, %arg5: memref<1x32x16xf32, #tpu.memory_space<vmem>>, %arg6: memref<1x32x1xf32, #tpu.memory_space<vmem>>, %arg7: memref<1x16x8xf32, #tpu.memory_space<vmem>>, %arg8: memref<1x16x1xf32, #tpu.memory_space<vmem>>, %arg9: memref<1x16x4xf32, #tpu.memory_space<vmem>>, %arg10: memref<1x16x1xf32, #tpu.memory_space<vmem>>, %arg11: memref<1x16x128xf32, #tpu.memory_space<vmem>>, %arg12: memref<16x8xf32, #tpu.memory_space<vmem>>, %arg13: memref<8x32xf32, #tpu.memory_space<vmem>>, %arg14: memref<4x128xf32, #tpu.memory_space<vmem>>) attributes {dimension_semantics = [#tpu.dimension_semantics<parallel>], iteration_bounds = array<i64: 2>, scalar_prefetch = 0 : i64, scratch_operands = 3 : i64, tpu.core_type = #tpu.core_type<tc>, window_params = [{pipeline_mode = #tpu.pipeline_mode<synchronous>, transform_indices = @transform_0, window_bounds = array<i64: 2, 32>}, {pipeline_mode = #tpu.pipeline_mode<synchronous>, transform_indices = @transform_1, window_bounds = array<i64: 32, 128>}, {pipeline_mode = #tpu.pipeline_mode<synchronous>, transform_indices = @transform_2, window_bounds = array<i64: 1, 128>}, {pipeline_mode = #tpu.pipeline_mode<synchronous>, transform_indices = @transform_3, window_bounds = array<i64: 2, 64>}, {transform_indices = @transform_4, window_bounds = array<i64: 1, 32, 16>}, {transform_indices = @transform_5, window_bounds = array<i64: 1, 32, 1>}, {transform_indices = @transform_6, window_bounds = array<i64: 1, 16, 8>}, {transform_indices = @transform_7, window_bounds = array<i64: 1, 16, 1>}, {transform_indices = @transform_8, window_bounds = array<i64: 1, 16, 4>}, {transform_indices = @transform_9, window_bounds = array<i64: 1, 16, 1>}, {transform_indices = @transform_10, window_bounds = array<i64: 1, 16, 128>}]} {
    %c0 = arith.constant 0 : index
    %c0_0 = arith.constant 0 : index
    %0 = vector.load %arg1[%c0, %c0_0] : memref<2x32xf32, #tpu.memory_space<vmem>>, vector<2x32xf32>
    %c0_1 = arith.constant 0 : index
    %c0_2 = arith.constant 0 : index
    %1 = vector.load %arg2[%c0_1, %c0_2] : memref<32x128xf32, #tpu.memory_space<vmem>>, vector<32x128xf32>
    %cst = arith.constant dense<0.000000e+00> : vector<2x128xf32>
    %2 = tpu.matmul %0, %1, %cst {dimension_numbers = #tpu.dot_dimension_numbers<[1], [0], [0], [1], [0, 0, 1, 1], [], []>} : vector<2x32xf32>, vector<32x128xf32>, vector<2x128xf32> -> vector<2x128xf32>
    %c0_3 = arith.constant 0 : index
    %c0_4 = arith.constant 0 : index
    %3 = vector.load %arg3[%c0_3, %c0_4] : memref<1x128xf32, #tpu.memory_space<vmem>>, vector<1x128xf32>
    %4 = vector.broadcast %3 : vector<1x128xf32> to vector<2x128xf32>
    %5 = arith.addf %2, %4 : vector<2x128xf32>
    %6 = vector.extract_strided_slice %5 {offsets = [0, 0], sizes = [2, 64], strides = [1, 1]} : vector<2x128xf32> to vector<2x64xf32>
    %cst_5 = arith.constant 5.000000e-01 : f32
    %7 = vector.broadcast %cst_5 : f32 to vector<2x64xf32>
    %8 = arith.mulf %7, %6 : vector<2x64xf32>
    %cst_6 = arith.constant 1.41421354 : f32
    %9 = vector.broadcast %cst_6 : f32 to vector<2x64xf32>
    %10 = arith.divf %6, %9 : vector<2x64xf32>
    %11 = math.absf %10 : vector<2x64xf32>
    %cst_7 = arith.constant 0.327591091 : f32
    %12 = vector.broadcast %cst_7 : f32 to vector<2x64xf32>
    %13 = arith.mulf %12, %11 : vector<2x64xf32>
    %cst_8 = arith.constant 1.000000e+00 : f32
    %14 = vector.broadcast %cst_8 : f32 to vector<2x64xf32>
    %15 = arith.addf %14, %13 : vector<2x64xf32>
    %cst_9 = arith.constant 1.000000e+00 : f32
    %16 = vector.broadcast %cst_9 : f32 to vector<2x64xf32>
    %17 = arith.divf %16, %15 : vector<2x64xf32>
    %cst_10 = arith.constant 1.06140542 : f32
    %18 = vector.broadcast %cst_10 : f32 to vector<2x64xf32>
    %19 = arith.mulf %17, %18 : vector<2x64xf32>
    %cst_11 = arith.constant -1.45315206 : f32
    %20 = vector.broadcast %cst_11 : f32 to vector<2x64xf32>
    %21 = arith.addf %20, %19 : vector<2x64xf32>
    %22 = arith.mulf %17, %21 : vector<2x64xf32>
    %cst_12 = arith.constant 1.42141378 : f32
    %23 = vector.broadcast %cst_12 : f32 to vector<2x64xf32>
    %24 = arith.addf %23, %22 : vector<2x64xf32>
    %25 = arith.mulf %17, %24 : vector<2x64xf32>
    %cst_13 = arith.constant -0.284496725 : f32
    %26 = vector.broadcast %cst_13 : f32 to vector<2x64xf32>
    %27 = arith.addf %26, %25 : vector<2x64xf32>
    %28 = arith.mulf %17, %27 : vector<2x64xf32>
    %cst_14 = arith.constant 0.254829586 : f32
    %29 = vector.broadcast %cst_14 : f32 to vector<2x64xf32>
    %30 = arith.addf %29, %28 : vector<2x64xf32>
    %31 = arith.mulf %17, %30 : vector<2x64xf32>
    %cst_15 = arith.constant 0.000000e+00 : f32
    %32 = vector.broadcast %cst_15 : f32 to vector<2x64xf32>
    %33 = arith.subf %32, %11 : vector<2x64xf32>
    %34 = arith.mulf %33, %11 : vector<2x64xf32>
    %35 = math.exp %34 : vector<2x64xf32>
    %36 = arith.mulf %31, %35 : vector<2x64xf32>
    %cst_16 = arith.constant 1.000000e+00 : f32
    %37 = vector.broadcast %cst_16 : f32 to vector<2x64xf32>
    %38 = arith.subf %37, %36 : vector<2x64xf32>
    %cst_17 = arith.constant 0.000000e+00 : f32
    %39 = vector.broadcast %cst_17 : f32 to vector<2x64xf32>
    %40 = arith.cmpf oge, %10, %39 : vector<2x64xf32>
    %cst_18 = arith.constant 0.000000e+00 : f32
    %41 = vector.broadcast %cst_18 : f32 to vector<2x64xf32>
    %42 = arith.subf %41, %38 : vector<2x64xf32>
    %43 = arith.select %40, %38, %42 : vector<2x64xi1>, vector<2x64xf32>
    %cst_19 = arith.constant 1.000000e+00 : f32
    %44 = vector.broadcast %cst_19 : f32 to vector<2x64xf32>
    %45 = arith.addf %44, %43 : vector<2x64xf32>
    %46 = arith.mulf %8, %45 : vector<2x64xf32>
    %c0_20 = arith.constant 0 : index
    %c0_21 = arith.constant 0 : index
    %47 = vector.load %arg4[%c0_20, %c0_21] : memref<2x64xf32, #tpu.memory_space<vmem>>, vector<2x64xf32>
    %48 = vector.extract_strided_slice %5 {offsets = [0, 64], sizes = [2, 64], strides = [1, 1]} : vector<2x128xf32> to vector<2x64xf32>
    %cst_22 = arith.constant 5.000000e-01 : f32
    %49 = vector.broadcast %cst_22 : f32 to vector<2x64xf32>
    %50 = arith.mulf %49, %48 : vector<2x64xf32>
    %cst_23 = arith.constant 1.41421354 : f32
    %51 = vector.broadcast %cst_23 : f32 to vector<2x64xf32>
    %52 = arith.divf %48, %51 : vector<2x64xf32>
    %53 = math.absf %52 : vector<2x64xf32>
    %cst_24 = arith.constant 0.327591091 : f32
    %54 = vector.broadcast %cst_24 : f32 to vector<2x64xf32>
    %55 = arith.mulf %54, %53 : vector<2x64xf32>
    %cst_25 = arith.constant 1.000000e+00 : f32
    %56 = vector.broadcast %cst_25 : f32 to vector<2x64xf32>
    %57 = arith.addf %56, %55 : vector<2x64xf32>
    %cst_26 = arith.constant 1.000000e+00 : f32
    %58 = vector.broadcast %cst_26 : f32 to vector<2x64xf32>
    %59 = arith.divf %58, %57 : vector<2x64xf32>
    %cst_27 = arith.constant 1.06140542 : f32
    %60 = vector.broadcast %cst_27 : f32 to vector<2x64xf32>
    %61 = arith.mulf %59, %60 : vector<2x64xf32>
    %cst_28 = arith.constant -1.45315206 : f32
    %62 = vector.broadcast %cst_28 : f32 to vector<2x64xf32>
    %63 = arith.addf %62, %61 : vector<2x64xf32>
    %64 = arith.mulf %59, %63 : vector<2x64xf32>
    %cst_29 = arith.constant 1.42141378 : f32
    %65 = vector.broadcast %cst_29 : f32 to vector<2x64xf32>
    %66 = arith.addf %65, %64 : vector<2x64xf32>
    %67 = arith.mulf %59, %66 : vector<2x64xf32>
    %cst_30 = arith.constant -0.284496725 : f32
    %68 = vector.broadcast %cst_30 : f32 to vector<2x64xf32>
    %69 = arith.addf %68, %67 : vector<2x64xf32>
    %70 = arith.mulf %59, %69 : vector<2x64xf32>
    %cst_31 = arith.constant 0.254829586 : f32
    %71 = vector.broadcast %cst_31 : f32 to vector<2x64xf32>
    %72 = arith.addf %71, %70 : vector<2x64xf32>
    %73 = arith.mulf %59, %72 : vector<2x64xf32>
    %cst_32 = arith.constant 0.000000e+00 : f32
    %74 = vector.broadcast %cst_32 : f32 to vector<2x64xf32>
    %75 = arith.subf %74, %53 : vector<2x64xf32>
    %76 = arith.mulf %75, %53 : vector<2x64xf32>
    %77 = math.exp %76 : vector<2x64xf32>
    %78 = arith.mulf %73, %77 : vector<2x64xf32>
    %cst_33 = arith.constant 1.000000e+00 : f32
    %79 = vector.broadcast %cst_33 : f32 to vector<2x64xf32>
    %80 = arith.subf %79, %78 : vector<2x64xf32>
    %cst_34 = arith.constant 0.000000e+00 : f32
    %81 = vector.broadcast %cst_34 : f32 to vector<2x64xf32>
    %82 = arith.cmpf oge, %52, %81 : vector<2x64xf32>
    %cst_35 = arith.constant 0.000000e+00 : f32
    %83 = vector.broadcast %cst_35 : f32 to vector<2x64xf32>
    %84 = arith.subf %83, %80 : vector<2x64xf32>
    %85 = arith.select %82, %80, %84 : vector<2x64xi1>, vector<2x64xf32>
    %cst_36 = arith.constant 1.000000e+00 : f32
    %86 = vector.broadcast %cst_36 : f32 to vector<2x64xf32>
    %87 = arith.addf %86, %85 : vector<2x64xf32>
    %88 = arith.mulf %50, %87 : vector<2x64xf32>
    %89 = arith.mulf %47, %88 : vector<2x64xf32>
    %90 = arith.addf %46, %89 : vector<2x64xf32>
    %91 = vector.extract_strided_slice %90 {offsets = [0, 0], sizes = [1, 4], strides = [1, 1]} : vector<2x64xf32> to vector<1x4xf32>
    %c0_37 = arith.constant 0 : index
    %c0_38 = arith.constant 0 : index
    %92 = vector.load %arg12[%c0_37, %c0_38] : memref<16x8xf32, #tpu.memory_space<vmem>>, vector<1x4xf32>
    tpu.vector_store %arg12[%c0_37, %c0_38], %91 {strides = array<i32>} : memref<16x8xf32, #tpu.memory_space<vmem>>, vector<1x4xf32>,
    %93 = vector.extract_strided_slice %90 {offsets = [0, 4], sizes = [1, 4], strides = [1, 1]} : vector<2x64xf32> to vector<1x4xf32>
    %c1 = arith.constant 1 : index
    %c0_39 = arith.constant 0 : index
    %94 = vector.load %arg12[%c1, %c0_39] : memref<16x8xf32, #tpu.memory_space<vmem>>, vector<1x4xf32>
    tpu.vector_store %arg12[%c1, %c0_39], %93 {strides = array<i32>} : memref<16x8xf32, #tpu.memory_space<vmem>>, vector<1x4xf32>,
    %95 = vector.extract_strided_slice %90 {offsets = [0, 8], sizes = [1, 4], strides = [1, 1]} : vector<2x64xf32> to vector<1x4xf32>
    %c2 = arith.constant 2 : index
    %c0_40 = arith.constant 0 : index
    %96 = vector.load %arg12[%c2, %c0_40] : memref<16x8xf32, #tpu.memory_space<vmem>>, vector<1x4xf32>
    tpu.vector_store %arg12[%c2, %c0_40], %95 {strides = array<i32>} : memref<16x8xf32, #tpu.memory_space<vmem>>, vector<1x4xf32>,
    %97 = vector.extract_strided_slice %90 {offsets = [0, 12], sizes = [1, 4], strides = [1, 1]} : vector<2x64xf32> to vector<1x4xf32>
    %c3 = arith.constant 3 : index
    %c0_41 = arith.constant 0 : index
    %98 = vector.load %arg12[%c3, %c0_41] : memref<16x8xf32, #tpu.memory_space<vmem>>, vector<1x4xf32>
    tpu.vector_store %arg12[%c3, %c0_41], %97 {strides = array<i32>} : memref<16x8xf32, #tpu.memory_space<vmem>>, vector<1x4xf32>,
    %99 = vector.extract_strided_slice %90 {offsets = [0, 16], sizes = [1, 4], strides = [1, 1]} : vector<2x64xf32> to vector<1x4xf32>
    %c4 = arith.constant 4 : index
    %c0_42 = arith.constant 0 : index
    %100 = vector.load %arg12[%c4, %c0_42] : memref<16x8xf32, #tpu.memory_space<vmem>>, vector<1x4xf32>
    tpu.vector_store %arg12[%c4, %c0_42], %99 {strides = array<i32>} : memref<16x8xf32, #tpu.memory_space<vmem>>, vector<1x4xf32>,
    %101 = vector.extract_strided_slice %90 {offsets = [0, 20], sizes = [1, 4], strides = [1, 1]} : vector<2x64xf32> to vector<1x4xf32>
    %c5 = arith.constant 5 : index
    %c0_43 = arith.constant 0 : index
    %102 = vector.load %arg12[%c5, %c0_43] : memref<16x8xf32, #tpu.memory_space<vmem>>, vector<1x4xf32>
    tpu.vector_store %arg12[%c5, %c0_43], %101 {strides = array<i32>} : memref<16x8xf32, #tpu.memory_space<vmem>>, vector<1x4xf32>,
    %103 = vector.extract_strided_slice %90 {offsets = [0, 24], sizes = [1, 4], strides = [1, 1]} : vector<2x64xf32> to vector<1x4xf32>
    %c6 = arith.constant 6 : index
    %c0_44 = arith.constant 0 : index
    %104 = vector.load %arg12[%c6, %c0_44] : memref<16x8xf32, #tpu.memory_space<vmem>>, vector<1x4xf32>
    tpu.vector_store %arg12[%c6, %c0_44], %103 {strides = array<i32>} : memref<16x8xf32, #tpu.memory_space<vmem>>, vector<1x4xf32>,
    %105 = vector.extract_strided_slice %90 {offsets = [0, 28], sizes = [1, 4], strides = [1, 1]} : vector<2x64xf32> to vector<1x4xf32>
    %c7 = arith.constant 7 : index
    %c0_45 = arith.constant 0 : index
    %106 = vector.load %arg12[%c7, %c0_45] : memref<16x8xf32, #tpu.memory_space<vmem>>, vector<1x4xf32>
    tpu.vector_store %arg12[%c7, %c0_45], %105 {strides = array<i32>} : memref<16x8xf32, #tpu.memory_space<vmem>>, vector<1x4xf32>,
    %107 = vector.extract_strided_slice %90 {offsets = [0, 32], sizes = [1, 4], strides = [1, 1]} : vector<2x64xf32> to vector<1x4xf32>
    %c8 = arith.constant 8 : index
    %c0_46 = arith.constant 0 : index
    %108 = vector.load %arg12[%c8, %c0_46] : memref<16x8xf32, #tpu.memory_space<vmem>>, vector<1x4xf32>
    tpu.vector_store %arg12[%c8, %c0_46], %107 {strides = array<i32>} : memref<16x8xf32, #tpu.memory_space<vmem>>, vector<1x4xf32>,
    %109 = vector.extract_strided_slice %90 {offsets = [0, 36], sizes = [1, 4], strides = [1, 1]} : vector<2x64xf32> to vector<1x4xf32>
    %c9 = arith.constant 9 : index
    %c0_47 = arith.constant 0 : index
    %110 = vector.load %arg12[%c9, %c0_47] : memref<16x8xf32, #tpu.memory_space<vmem>>, vector<1x4xf32>
    tpu.vector_store %arg12[%c9, %c0_47], %109 {strides = array<i32>} : memref<16x8xf32, #tpu.memory_space<vmem>>, vector<1x4xf32>,
    %111 = vector.extract_strided_slice %90 {offsets = [0, 40], sizes = [1, 4], strides = [1, 1]} : vector<2x64xf32> to vector<1x4xf32>
    %c10 = arith.constant 10 : index
    %c0_48 = arith.constant 0 : index
    %112 = vector.load %arg12[%c10, %c0_48] : memref<16x8xf32, #tpu.memory_space<vmem>>, vector<1x4xf32>
    tpu.vector_store %arg12[%c10, %c0_48], %111 {strides = array<i32>} : memref<16x8xf32, #tpu.memory_space<vmem>>, vector<1x4xf32>,
    %113 = vector.extract_strided_slice %90 {offsets = [0, 44], sizes = [1, 4], strides = [1, 1]} : vector<2x64xf32> to vector<1x4xf32>
    %c11 = arith.constant 11 : index
    %c0_49 = arith.constant 0 : index
    %114 = vector.load %arg12[%c11, %c0_49] : memref<16x8xf32, #tpu.memory_space<vmem>>, vector<1x4xf32>
    tpu.vector_store %arg12[%c11, %c0_49], %113 {strides = array<i32>} : memref<16x8xf32, #tpu.memory_space<vmem>>, vector<1x4xf32>,
    %115 = vector.extract_strided_slice %90 {offsets = [0, 48], sizes = [1, 4], strides = [1, 1]} : vector<2x64xf32> to vector<1x4xf32>
    %c12 = arith.constant 12 : index
    %c0_50 = arith.constant 0 : index
    %116 = vector.load %arg12[%c12, %c0_50] : memref<16x8xf32, #tpu.memory_space<vmem>>, vector<1x4xf32>
    tpu.vector_store %arg12[%c12, %c0_50], %115 {strides = array<i32>} : memref<16x8xf32, #tpu.memory_space<vmem>>, vector<1x4xf32>,
    %117 = vector.extract_strided_slice %90 {offsets = [0, 52], sizes = [1, 4], strides = [1, 1]} : vector<2x64xf32> to vector<1x4xf32>
    %c13 = arith.constant 13 : index
    %c0_51 = arith.constant 0 : index
    %118 = vector.load %arg12[%c13, %c0_51] : memref<16x8xf32, #tpu.memory_space<vmem>>, vector<1x4xf32>
    tpu.vector_store %arg12[%c13, %c0_51], %117 {strides = array<i32>} : memref<16x8xf32, #tpu.memory_space<vmem>>, vector<1x4xf32>,
    %119 = vector.extract_strided_slice %90 {offsets = [0, 56], sizes = [1, 4], strides = [1, 1]} : vector<2x64xf32> to vector<1x4xf32>
    %c14 = arith.constant 14 : index
    %c0_52 = arith.constant 0 : index
    %120 = vector.load %arg12[%c14, %c0_52] : memref<16x8xf32, #tpu.memory_space<vmem>>, vector<1x4xf32>
    tpu.vector_store %arg12[%c14, %c0_52], %119 {strides = array<i32>} : memref<16x8xf32, #tpu.memory_space<vmem>>, vector<1x4xf32>,
    %121 = vector.extract_strided_slice %90 {offsets = [0, 60], sizes = [1, 4], strides = [1, 1]} : vector<2x64xf32> to vector<1x4xf32>
    %c15 = arith.constant 15 : index
    %c0_53 = arith.constant 0 : index
    %122 = vector.load %arg12[%c15, %c0_53] : memref<16x8xf32, #tpu.memory_space<vmem>>, vector<1x4xf32>
    tpu.vector_store %arg12[%c15, %c0_53], %121 {strides = array<i32>} : memref<16x8xf32, #tpu.memory_space<vmem>>, vector<1x4xf32>,
    %123 = vector.extract_strided_slice %90 {offsets = [1, 0], sizes = [1, 4], strides = [1, 1]} : vector<2x64xf32> to vector<1x4xf32>
    %c0_54 = arith.constant 0 : index
    %c4_55 = arith.constant 4 : index
    %124 = vector.load %arg12[%c0_54, %c4_55] : memref<16x8xf32, #tpu.memory_space<vmem>>, vector<1x4xf32>
    tpu.vector_store %arg12[%c0_54, %c4_55], %123 {strides = array<i32>} : memref<16x8xf32, #tpu.memory_space<vmem>>, vector<1x4xf32>,
    %125 = vector.extract_strided_slice %90 {offsets = [1, 4], sizes = [1, 4], strides = [1, 1]} : vector<2x64xf32> to vector<1x4xf32>
    %c1_56 = arith.constant 1 : index
    %c4_57 = arith.constant 4 : index
    %126 = vector.load %arg12[%c1_56, %c4_57] : memref<16x8xf32, #tpu.memory_space<vmem>>, vector<1x4xf32>
    tpu.vector_store %arg12[%c1_56, %c4_57], %125 {strides = array<i32>} : memref<16x8xf32, #tpu.memory_space<vmem>>, vector<1x4xf32>,
    %127 = vector.extract_strided_slice %90 {offsets = [1, 8], sizes = [1, 4], strides = [1, 1]} : vector<2x64xf32> to vector<1x4xf32>
    %c2_58 = arith.constant 2 : index
    %c4_59 = arith.constant 4 : index
    %128 = vector.load %arg12[%c2_58, %c4_59] : memref<16x8xf32, #tpu.memory_space<vmem>>, vector<1x4xf32>
    tpu.vector_store %arg12[%c2_58, %c4_59], %127 {strides = array<i32>} : memref<16x8xf32, #tpu.memory_space<vmem>>, vector<1x4xf32>,
    %129 = vector.extract_strided_slice %90 {offsets = [1, 12], sizes = [1, 4], strides = [1, 1]} : vector<2x64xf32> to vector<1x4xf32>
    %c3_60 = arith.constant 3 : index
    %c4_61 = arith.constant 4 : index
    %130 = vector.load %arg12[%c3_60, %c4_61] : memref<16x8xf32, #tpu.memory_space<vmem>>, vector<1x4xf32>
    tpu.vector_store %arg12[%c3_60, %c4_61], %129 {strides = array<i32>} : memref<16x8xf32, #tpu.memory_space<vmem>>, vector<1x4xf32>,
    %131 = vector.extract_strided_slice %90 {offsets = [1, 16], sizes = [1, 4], strides = [1, 1]} : vector<2x64xf32> to vector<1x4xf32>
    %c4_62 = arith.constant 4 : index
    %c4_63 = arith.constant 4 : index
    %132 = vector.load %arg12[%c4_62, %c4_63] : memref<16x8xf32, #tpu.memory_space<vmem>>, vector<1x4xf32>
    tpu.vector_store %arg12[%c4_62, %c4_63], %131 {strides = array<i32>} : memref<16x8xf32, #tpu.memory_space<vmem>>, vector<1x4xf32>,
    %133 = vector.extract_strided_slice %90 {offsets = [1, 20], sizes = [1, 4], strides = [1, 1]} : vector<2x64xf32> to vector<1x4xf32>
    %c5_64 = arith.constant 5 : index
    %c4_65 = arith.constant 4 : index
    %134 = vector.load %arg12[%c5_64, %c4_65] : memref<16x8xf32, #tpu.memory_space<vmem>>, vector<1x4xf32>
    tpu.vector_store %arg12[%c5_64, %c4_65], %133 {strides = array<i32>} : memref<16x8xf32, #tpu.memory_space<vmem>>, vector<1x4xf32>,
    %135 = vector.extract_strided_slice %90 {offsets = [1, 24], sizes = [1, 4], strides = [1, 1]} : vector<2x64xf32> to vector<1x4xf32>
    %c6_66 = arith.constant 6 : index
    %c4_67 = arith.constant 4 : index
    %136 = vector.load %arg12[%c6_66, %c4_67] : memref<16x8xf32, #tpu.memory_space<vmem>>, vector<1x4xf32>
    tpu.vector_store %arg12[%c6_66, %c4_67], %135 {strides = array<i32>} : memref<16x8xf32, #tpu.memory_space<vmem>>, vector<1x4xf32>,
    %137 = vector.extract_strided_slice %90 {offsets = [1, 28], sizes = [1, 4], strides = [1, 1]} : vector<2x64xf32> to vector<1x4xf32>
    %c7_68 = arith.constant 7 : index
    %c4_69 = arith.constant 4 : index
    %138 = vector.load %arg12[%c7_68, %c4_69] : memref<16x8xf32, #tpu.memory_space<vmem>>, vector<1x4xf32>
    tpu.vector_store %arg12[%c7_68, %c4_69], %137 {strides = array<i32>} : memref<16x8xf32, #tpu.memory_space<vmem>>, vector<1x4xf32>,
    %139 = vector.extract_strided_slice %90 {offsets = [1, 32], sizes = [1, 4], strides = [1, 1]} : vector<2x64xf32> to vector<1x4xf32>
    %c8_70 = arith.constant 8 : index
    %c4_71 = arith.constant 4 : index
    %140 = vector.load %arg12[%c8_70, %c4_71] : memref<16x8xf32, #tpu.memory_space<vmem>>, vector<1x4xf32>
    tpu.vector_store %arg12[%c8_70, %c4_71], %139 {strides = array<i32>} : memref<16x8xf32, #tpu.memory_space<vmem>>, vector<1x4xf32>,
    %141 = vector.extract_strided_slice %90 {offsets = [1, 36], sizes = [1, 4], strides = [1, 1]} : vector<2x64xf32> to vector<1x4xf32>
    %c9_72 = arith.constant 9 : index
    %c4_73 = arith.constant 4 : index
    %142 = vector.load %arg12[%c9_72, %c4_73] : memref<16x8xf32, #tpu.memory_space<vmem>>, vector<1x4xf32>
    tpu.vector_store %arg12[%c9_72, %c4_73], %141 {strides = array<i32>} : memref<16x8xf32, #tpu.memory_space<vmem>>, vector<1x4xf32>,
    %143 = vector.extract_strided_slice %90 {offsets = [1, 40], sizes = [1, 4], strides = [1, 1]} : vector<2x64xf32> to vector<1x4xf32>
    %c10_74 = arith.constant 10 : index
    %c4_75 = arith.constant 4 : index
    %144 = vector.load %arg12[%c10_74, %c4_75] : memref<16x8xf32, #tpu.memory_space<vmem>>, vector<1x4xf32>
    tpu.vector_store %arg12[%c10_74, %c4_75], %143 {strides = array<i32>} : memref<16x8xf32, #tpu.memory_space<vmem>>, vector<1x4xf32>,
    %145 = vector.extract_strided_slice %90 {offsets = [1, 44], sizes = [1, 4], strides = [1, 1]} : vector<2x64xf32> to vector<1x4xf32>
    %c11_76 = arith.constant 11 : index
    %c4_77 = arith.constant 4 : index
    %146 = vector.load %arg12[%c11_76, %c4_77] : memref<16x8xf32, #tpu.memory_space<vmem>>, vector<1x4xf32>
    tpu.vector_store %arg12[%c11_76, %c4_77], %145 {strides = array<i32>} : memref<16x8xf32, #tpu.memory_space<vmem>>, vector<1x4xf32>,
    %147 = vector.extract_strided_slice %90 {offsets = [1, 48], sizes = [1, 4], strides = [1, 1]} : vector<2x64xf32> to vector<1x4xf32>
    %c12_78 = arith.constant 12 : index
    %c4_79 = arith.constant 4 : index
    %148 = vector.load %arg12[%c12_78, %c4_79] : memref<16x8xf32, #tpu.memory_space<vmem>>, vector<1x4xf32>
    tpu.vector_store %arg12[%c12_78, %c4_79], %147 {strides = array<i32>} : memref<16x8xf32, #tpu.memory_space<vmem>>, vector<1x4xf32>,
    %149 = vector.extract_strided_slice %90 {offsets = [1, 52], sizes = [1, 4], strides = [1, 1]} : vector<2x64xf32> to vector<1x4xf32>
    %c13_80 = arith.constant 13 : index
    %c4_81 = arith.constant 4 : index
    %150 = vector.load %arg12[%c13_80, %c4_81] : memref<16x8xf32, #tpu.memory_space<vmem>>, vector<1x4xf32>
    tpu.vector_store %arg12[%c13_80, %c4_81], %149 {strides = array<i32>} : memref<16x8xf32, #tpu.memory_space<vmem>>, vector<1x4xf32>,
    %151 = vector.extract_strided_slice %90 {offsets = [1, 56], sizes = [1, 4], strides = [1, 1]} : vector<2x64xf32> to vector<1x4xf32>
    %c14_82 = arith.constant 14 : index
    %c4_83 = arith.constant 4 : index
    %152 = vector.load %arg12[%c14_82, %c4_83] : memref<16x8xf32, #tpu.memory_space<vmem>>, vector<1x4xf32>
    tpu.vector_store %arg12[%c14_82, %c4_83], %151 {strides = array<i32>} : memref<16x8xf32, #tpu.memory_space<vmem>>, vector<1x4xf32>,
    %153 = vector.extract_strided_slice %90 {offsets = [1, 60], sizes = [1, 4], strides = [1, 1]} : vector<2x64xf32> to vector<1x4xf32>
    %c15_84 = arith.constant 15 : index
    %c4_85 = arith.constant 4 : index
    %154 = vector.load %arg12[%c15_84, %c4_85] : memref<16x8xf32, #tpu.memory_space<vmem>>, vector<1x4xf32>
    tpu.vector_store %arg12[%c15_84, %c4_85], %153 {strides = array<i32>} : memref<16x8xf32, #tpu.memory_space<vmem>>, vector<1x4xf32>,
    %c0_86 = arith.constant 0 : index
    %c0_87 = arith.constant 0 : index
    %c0_88 = arith.constant 0 : index
    %155 = vector.load %arg5[%c0_86, %c0_87, %c0_88] : memref<1x32x16xf32, #tpu.memory_space<vmem>>, vector<1x32x16xf32>
    %156 = vector.shape_cast %155 : vector<1x32x16xf32> to vector<32x16xf32>
    %c0_89 = arith.constant 0 : index
    %c0_90 = arith.constant 0 : index
    %157 = vector.load %arg12[%c0_89, %c0_90] : memref<16x8xf32, #tpu.memory_space<vmem>>, vector<16x8xf32>
    %cst_91 = arith.constant dense<0.000000e+00> : vector<32x8xf32>
    %158 = tpu.matmul %156, %157, %cst_91 {dimension_numbers = #tpu.dot_dimension_numbers<[1], [0], [0], [1], [0, 0, 1, 1], [], []>} : vector<32x16xf32>, vector<16x8xf32>, vector<32x8xf32> -> vector<32x8xf32>
    %c0_92 = arith.constant 0 : index
    %c0_93 = arith.constant 0 : index
    %c0_94 = arith.constant 0 : index
    %159 = vector.load %arg6[%c0_92, %c0_93, %c0_94] : memref<1x32x1xf32, #tpu.memory_space<vmem>>, vector<1x32x1xf32>
    %160 = vector.shape_cast %159 : vector<1x32x1xf32> to vector<32x1xf32>
    %161 = vector.broadcast %160 : vector<32x1xf32> to vector<32x8xf32>
    %162 = arith.addf %158, %161 : vector<32x8xf32>
    %cst_95 = arith.constant 5.000000e-01 : f32
    %163 = vector.broadcast %cst_95 : f32 to vector<32x8xf32>
    %164 = arith.mulf %163, %162 : vector<32x8xf32>
    %cst_96 = arith.constant 1.41421354 : f32
    %165 = vector.broadcast %cst_96 : f32 to vector<32x8xf32>
    %166 = arith.divf %162, %165 : vector<32x8xf32>
    %167 = math.absf %166 : vector<32x8xf32>
    %cst_97 = arith.constant 0.327591091 : f32
    %168 = vector.broadcast %cst_97 : f32 to vector<32x8xf32>
    %169 = arith.mulf %168, %167 : vector<32x8xf32>
    %cst_98 = arith.constant 1.000000e+00 : f32
    %170 = vector.broadcast %cst_98 : f32 to vector<32x8xf32>
    %171 = arith.addf %170, %169 : vector<32x8xf32>
    %cst_99 = arith.constant 1.000000e+00 : f32
    %172 = vector.broadcast %cst_99 : f32 to vector<32x8xf32>
    %173 = arith.divf %172, %171 : vector<32x8xf32>
    %cst_100 = arith.constant 1.06140542 : f32
    %174 = vector.broadcast %cst_100 : f32 to vector<32x8xf32>
    %175 = arith.mulf %173, %174 : vector<32x8xf32>
    %cst_101 = arith.constant -1.45315206 : f32
    %176 = vector.broadcast %cst_101 : f32 to vector<32x8xf32>
    %177 = arith.addf %176, %175 : vector<32x8xf32>
    %178 = arith.mulf %173, %177 : vector<32x8xf32>
    %cst_102 = arith.constant 1.42141378 : f32
    %179 = vector.broadcast %cst_102 : f32 to vector<32x8xf32>
    %180 = arith.addf %179, %178 : vector<32x8xf32>
    %181 = arith.mulf %173, %180 : vector<32x8xf32>
    %cst_103 = arith.constant -0.284496725 : f32
    %182 = vector.broadcast %cst_103 : f32 to vector<32x8xf32>
    %183 = arith.addf %182, %181 : vector<32x8xf32>
    %184 = arith.mulf %173, %183 : vector<32x8xf32>
    %cst_104 = arith.constant 0.254829586 : f32
    %185 = vector.broadcast %cst_104 : f32 to vector<32x8xf32>
    %186 = arith.addf %185, %184 : vector<32x8xf32>
    %187 = arith.mulf %173, %186 : vector<32x8xf32>
    %cst_105 = arith.constant 0.000000e+00 : f32
    %188 = vector.broadcast %cst_105 : f32 to vector<32x8xf32>
    %189 = arith.subf %188, %167 : vector<32x8xf32>
    %190 = arith.mulf %189, %167 : vector<32x8xf32>
    %191 = math.exp %190 : vector<32x8xf32>
    %192 = arith.mulf %187, %191 : vector<32x8xf32>
    %cst_106 = arith.constant 1.000000e+00 : f32
    %193 = vector.broadcast %cst_106 : f32 to vector<32x8xf32>
    %194 = arith.subf %193, %192 : vector<32x8xf32>
    %cst_107 = arith.constant 0.000000e+00 : f32
    %195 = vector.broadcast %cst_107 : f32 to vector<32x8xf32>
    %196 = arith.cmpf oge, %166, %195 : vector<32x8xf32>
    %cst_108 = arith.constant 0.000000e+00 : f32
    %197 = vector.broadcast %cst_108 : f32 to vector<32x8xf32>
    %198 = arith.subf %197, %194 : vector<32x8xf32>
    %199 = arith.select %196, %194, %198 : vector<32x8xi1>, vector<32x8xf32>
    %cst_109 = arith.constant 1.000000e+00 : f32
    %200 = vector.broadcast %cst_109 : f32 to vector<32x8xf32>
    %201 = arith.addf %200, %199 : vector<32x8xf32>
    %202 = arith.mulf %164, %201 : vector<32x8xf32>
    %203 = vector.extract_strided_slice %202 {offsets = [0, 0], sizes = [8, 8], strides = [1, 1]} : vector<32x8xf32> to vector<8x8xf32>
    %c0_110 = arith.constant 0 : index
    %c0_111 = arith.constant 0 : index
    %204 = vector.load %arg13[%c0_110, %c0_111] : memref<8x32xf32, #tpu.memory_space<vmem>>, vector<8x8xf32>
    tpu.vector_store %arg13[%c0_110, %c0_111], %203 {strides = array<i32>} : memref<8x32xf32, #tpu.memory_space<vmem>>, vector<8x8xf32>,
    %205 = vector.extract_strided_slice %202 {offsets = [8, 0], sizes = [8, 8], strides = [1, 1]} : vector<32x8xf32> to vector<8x8xf32>
    %c0_112 = arith.constant 0 : index
    %c8_113 = arith.constant 8 : index
    %206 = vector.load %arg13[%c0_112, %c8_113] : memref<8x32xf32, #tpu.memory_space<vmem>>, vector<8x8xf32>
    tpu.vector_store %arg13[%c0_112, %c8_113], %205 {strides = array<i32>} : memref<8x32xf32, #tpu.memory_space<vmem>>, vector<8x8xf32>,
    %207 = vector.extract_strided_slice %202 {offsets = [16, 0], sizes = [8, 8], strides = [1, 1]} : vector<32x8xf32> to vector<8x8xf32>
    %c0_114 = arith.constant 0 : index
    %c16 = arith.constant 16 : index
    %208 = vector.load %arg13[%c0_114, %c16] : memref<8x32xf32, #tpu.memory_space<vmem>>, vector<8x8xf32>
    tpu.vector_store %arg13[%c0_114, %c16], %207 {strides = array<i32>} : memref<8x32xf32, #tpu.memory_space<vmem>>, vector<8x8xf32>,
    %209 = vector.extract_strided_slice %202 {offsets = [24, 0], sizes = [8, 8], strides = [1, 1]} : vector<32x8xf32> to vector<8x8xf32>
    %c0_115 = arith.constant 0 : index
    %c24 = arith.constant 24 : index
    %210 = vector.load %arg13[%c0_115, %c24] : memref<8x32xf32, #tpu.memory_space<vmem>>, vector<8x8xf32>
    tpu.vector_store %arg13[%c0_115, %c24], %209 {strides = array<i32>} : memref<8x32xf32, #tpu.memory_space<vmem>>, vector<8x8xf32>,
    %c0_116 = arith.constant 0 : index
    %c0_117 = arith.constant 0 : index
    %c0_118 = arith.constant 0 : index
    %211 = vector.load %arg7[%c0_116, %c0_117, %c0_118] : memref<1x16x8xf32, #tpu.memory_space<vmem>>, vector<1x16x8xf32>
    %212 = vector.shape_cast %211 : vector<1x16x8xf32> to vector<16x8xf32>
    %c0_119 = arith.constant 0 : index
    %c0_120 = arith.constant 0 : index
    %213 = vector.load %arg13[%c0_119, %c0_120] : memref<8x32xf32, #tpu.memory_space<vmem>>, vector<8x32xf32>
    %cst_121 = arith.constant dense<0.000000e+00> : vector<16x32xf32>
    %214 = tpu.matmul %212, %213, %cst_121 {dimension_numbers = #tpu.dot_dimension_numbers<[1], [0], [0], [1], [0, 0, 1, 1], [], []>} : vector<16x8xf32>, vector<8x32xf32>, vector<16x32xf32> -> vector<16x32xf32>
    %c0_122 = arith.constant 0 : index
    %c0_123 = arith.constant 0 : index
    %c0_124 = arith.constant 0 : index
    %215 = vector.load %arg8[%c0_122, %c0_123, %c0_124] : memref<1x16x1xf32, #tpu.memory_space<vmem>>, vector<1x16x1xf32>
    %216 = vector.shape_cast %215 : vector<1x16x1xf32> to vector<16x1xf32>
    %217 = vector.broadcast %216 : vector<16x1xf32> to vector<16x32xf32>
    %218 = arith.addf %214, %217 : vector<16x32xf32>
    %cst_125 = arith.constant 5.000000e-01 : f32
    %219 = vector.broadcast %cst_125 : f32 to vector<16x32xf32>
    %220 = arith.mulf %219, %218 : vector<16x32xf32>
    %cst_126 = arith.constant 1.41421354 : f32
    %221 = vector.broadcast %cst_126 : f32 to vector<16x32xf32>
    %222 = arith.divf %218, %221 : vector<16x32xf32>
    %223 = math.absf %222 : vector<16x32xf32>
    %cst_127 = arith.constant 0.327591091 : f32
    %224 = vector.broadcast %cst_127 : f32 to vector<16x32xf32>
    %225 = arith.mulf %224, %223 : vector<16x32xf32>
    %cst_128 = arith.constant 1.000000e+00 : f32
    %226 = vector.broadcast %cst_128 : f32 to vector<16x32xf32>
    %227 = arith.addf %226, %225 : vector<16x32xf32>
    %cst_129 = arith.constant 1.000000e+00 : f32
    %228 = vector.broadcast %cst_129 : f32 to vector<16x32xf32>
    %229 = arith.divf %228, %227 : vector<16x32xf32>
    %cst_130 = arith.constant 1.06140542 : f32
    %230 = vector.broadcast %cst_130 : f32 to vector<16x32xf32>
    %231 = arith.mulf %229, %230 : vector<16x32xf32>
    %cst_131 = arith.constant -1.45315206 : f32
    %232 = vector.broadcast %cst_131 : f32 to vector<16x32xf32>
    %233 = arith.addf %232, %231 : vector<16x32xf32>
    %234 = arith.mulf %229, %233 : vector<16x32xf32>
    %cst_132 = arith.constant 1.42141378 : f32
    %235 = vector.broadcast %cst_132 : f32 to vector<16x32xf32>
    %236 = arith.addf %235, %234 : vector<16x32xf32>
    %237 = arith.mulf %229, %236 : vector<16x32xf32>
    %cst_133 = arith.constant -0.284496725 : f32
    %238 = vector.broadcast %cst_133 : f32 to vector<16x32xf32>
    %239 = arith.addf %238, %237 : vector<16x32xf32>
    %240 = arith.mulf %229, %239 : vector<16x32xf32>
    %cst_134 = arith.constant 0.254829586 : f32
    %241 = vector.broadcast %cst_134 : f32 to vector<16x32xf32>
    %242 = arith.addf %241, %240 : vector<16x32xf32>
    %243 = arith.mulf %229, %242 : vector<16x32xf32>
    %cst_135 = arith.constant 0.000000e+00 : f32
    %244 = vector.broadcast %cst_135 : f32 to vector<16x32xf32>
    %245 = arith.subf %244, %223 : vector<16x32xf32>
    %246 = arith.mulf %245, %223 : vector<16x32xf32>
    %247 = math.exp %246 : vector<16x32xf32>
    %248 = arith.mulf %243, %247 : vector<16x32xf32>
    %cst_136 = arith.constant 1.000000e+00 : f32
    %249 = vector.broadcast %cst_136 : f32 to vector<16x32xf32>
    %250 = arith.subf %249, %248 : vector<16x32xf32>
    %cst_137 = arith.constant 0.000000e+00 : f32
    %251 = vector.broadcast %cst_137 : f32 to vector<16x32xf32>
    %252 = arith.cmpf oge, %222, %251 : vector<16x32xf32>
    %cst_138 = arith.constant 0.000000e+00 : f32
    %253 = vector.broadcast %cst_138 : f32 to vector<16x32xf32>
    %254 = arith.subf %253, %250 : vector<16x32xf32>
    %255 = arith.select %252, %250, %254 : vector<16x32xi1>, vector<16x32xf32>
    %cst_139 = arith.constant 1.000000e+00 : f32
    %256 = vector.broadcast %cst_139 : f32 to vector<16x32xf32>
    %257 = arith.addf %256, %255 : vector<16x32xf32>
    %258 = arith.mulf %220, %257 : vector<16x32xf32>
    %259 = vector.extract_strided_slice %258 {offsets = [0, 0], sizes = [4, 32], strides = [1, 1]} : vector<16x32xf32> to vector<4x32xf32>
    %c0_140 = arith.constant 0 : index
    %c0_141 = arith.constant 0 : index
    %260 = vector.load %arg14[%c0_140, %c0_141] : memref<4x128xf32, #tpu.memory_space<vmem>>, vector<4x32xf32>
    tpu.vector_store %arg14[%c0_140, %c0_141], %259 {strides = array<i32>} : memref<4x128xf32, #tpu.memory_space<vmem>>, vector<4x32xf32>,
    %261 = vector.extract_strided_slice %258 {offsets = [4, 0], sizes = [4, 32], strides = [1, 1]} : vector<16x32xf32> to vector<4x32xf32>
    %c0_142 = arith.constant 0 : index
    %c32 = arith.constant 32 : index
    %262 = vector.load %arg14[%c0_142, %c32] : memref<4x128xf32, #tpu.memory_space<vmem>>, vector<4x32xf32>
    tpu.vector_store %arg14[%c0_142, %c32], %261 {strides = array<i32>} : memref<4x128xf32, #tpu.memory_space<vmem>>, vector<4x32xf32>,
    %263 = vector.extract_strided_slice %258 {offsets = [8, 0], sizes = [4, 32], strides = [1, 1]} : vector<16x32xf32> to vector<4x32xf32>
    %c0_143 = arith.constant 0 : index
    %c64 = arith.constant 64 : index
    %264 = vector.load %arg14[%c0_143, %c64] : memref<4x128xf32, #tpu.memory_space<vmem>>, vector<4x32xf32>
    tpu.vector_store %arg14[%c0_143, %c64], %263 {strides = array<i32>} : memref<4x128xf32, #tpu.memory_space<vmem>>, vector<4x32xf32>,
    %265 = vector.extract_strided_slice %258 {offsets = [12, 0], sizes = [4, 32], strides = [1, 1]} : vector<16x32xf32> to vector<4x32xf32>
    %c0_144 = arith.constant 0 : index
    %c96 = arith.constant 96 : index
    %266 = vector.load %arg14[%c0_144, %c96] : memref<4x128xf32, #tpu.memory_space<vmem>>, vector<4x32xf32>
    tpu.vector_store %arg14[%c0_144, %c96], %265 {strides = array<i32>} : memref<4x128xf32, #tpu.memory_space<vmem>>, vector<4x32xf32>,
    %c0_145 = arith.constant 0 : index
    %c0_146 = arith.constant 0 : index
    %c0_147 = arith.constant 0 : index
    %267 = vector.load %arg9[%c0_145, %c0_146, %c0_147] : memref<1x16x4xf32, #tpu.memory_space<vmem>>, vector<1x16x4xf32>
    %268 = vector.shape_cast %267 : vector<1x16x4xf32> to vector<16x4xf32>
    %c0_148 = arith.constant 0 : index
    %c0_149 = arith.constant 0 : index
    %269 = vector.load %arg14[%c0_148, %c0_149] : memref<4x128xf32, #tpu.memory_space<vmem>>, vector<4x128xf32>
    %cst_150 = arith.constant dense<0.000000e+00> : vector<16x128xf32>
    %270 = tpu.matmul %268, %269, %cst_150 {dimension_numbers = #tpu.dot_dimension_numbers<[1], [0], [0], [1], [0, 0, 1, 1], [], []>} : vector<16x4xf32>, vector<4x128xf32>, vector<16x128xf32> -> vector<16x128xf32>
    %c0_151 = arith.constant 0 : index
    %c0_152 = arith.constant 0 : index
    %c0_153 = arith.constant 0 : index
    %271 = vector.load %arg10[%c0_151, %c0_152, %c0_153] : memref<1x16x1xf32, #tpu.memory_space<vmem>>, vector<1x16x1xf32>
    %272 = vector.shape_cast %271 : vector<1x16x1xf32> to vector<16x1xf32>
    %273 = vector.broadcast %272 : vector<16x1xf32> to vector<16x128xf32>
    %274 = arith.addf %270, %273 : vector<16x128xf32>
    %cst_154 = arith.constant 5.000000e-01 : f32
    %275 = vector.broadcast %cst_154 : f32 to vector<16x128xf32>
    %276 = arith.mulf %275, %274 : vector<16x128xf32>
    %cst_155 = arith.constant 1.41421354 : f32
    %277 = vector.broadcast %cst_155 : f32 to vector<16x128xf32>
    %278 = arith.divf %274, %277 : vector<16x128xf32>
    %279 = math.absf %278 : vector<16x128xf32>
    %cst_156 = arith.constant 0.327591091 : f32
    %280 = vector.broadcast %cst_156 : f32 to vector<16x128xf32>
    %281 = arith.mulf %280, %279 : vector<16x128xf32>
    %cst_157 = arith.constant 1.000000e+00 : f32
    %282 = vector.broadcast %cst_157 : f32 to vector<16x128xf32>
    %283 = arith.addf %282, %281 : vector<16x128xf32>
    %cst_158 = arith.constant 1.000000e+00 : f32
    %284 = vector.broadcast %cst_158 : f32 to vector<16x128xf32>
    %285 = arith.divf %284, %283 : vector<16x128xf32>
    %cst_159 = arith.constant 1.06140542 : f32
    %286 = vector.broadcast %cst_159 : f32 to vector<16x128xf32>
    %287 = arith.mulf %285, %286 : vector<16x128xf32>
    %cst_160 = arith.constant -1.45315206 : f32
    %288 = vector.broadcast %cst_160 : f32 to vector<16x128xf32>
    %289 = arith.addf %288, %287 : vector<16x128xf32>
    %290 = arith.mulf %285, %289 : vector<16x128xf32>
    %cst_161 = arith.constant 1.42141378 : f32
    %291 = vector.broadcast %cst_161 : f32 to vector<16x128xf32>
    %292 = arith.addf %291, %290 : vector<16x128xf32>
    %293 = arith.mulf %285, %292 : vector<16x128xf32>
    %cst_162 = arith.constant -0.284496725 : f32
    %294 = vector.broadcast %cst_162 : f32 to vector<16x128xf32>
    %295 = arith.addf %294, %293 : vector<16x128xf32>
    %296 = arith.mulf %285, %295 : vector<16x128xf32>
    %cst_163 = arith.constant 0.254829586 : f32
    %297 = vector.broadcast %cst_163 : f32 to vector<16x128xf32>
    %298 = arith.addf %297, %296 : vector<16x128xf32>
    %299 = arith.mulf %285, %298 : vector<16x128xf32>
    %cst_164 = arith.constant 0.000000e+00 : f32
    %300 = vector.broadcast %cst_164 : f32 to vector<16x128xf32>
    %301 = arith.subf %300, %279 : vector<16x128xf32>
    %302 = arith.mulf %301, %279 : vector<16x128xf32>
    %303 = math.exp %302 : vector<16x128xf32>
    %304 = arith.mulf %299, %303 : vector<16x128xf32>
    %cst_165 = arith.constant 1.000000e+00 : f32
    %305 = vector.broadcast %cst_165 : f32 to vector<16x128xf32>
    %306 = arith.subf %305, %304 : vector<16x128xf32>
    %cst_166 = arith.constant 0.000000e+00 : f32
    %307 = vector.broadcast %cst_166 : f32 to vector<16x128xf32>
    %308 = arith.cmpf oge, %278, %307 : vector<16x128xf32>
    %cst_167 = arith.constant 0.000000e+00 : f32
    %309 = vector.broadcast %cst_167 : f32 to vector<16x128xf32>
    %310 = arith.subf %309, %306 : vector<16x128xf32>
    %311 = arith.select %308, %306, %310 : vector<16x128xi1>, vector<16x128xf32>
    %cst_168 = arith.constant 1.000000e+00 : f32
    %312 = vector.broadcast %cst_168 : f32 to vector<16x128xf32>
    %313 = arith.addf %312, %311 : vector<16x128xf32>
    %314 = arith.mulf %276, %313 : vector<16x128xf32>
    %c0_169 = arith.constant 0 : index
    %c0_170 = arith.constant 0 : index
    %c0_171 = arith.constant 0 : index
    %315 = vector.load %arg11[%c0_169, %c0_170, %c0_171] : memref<1x16x128xf32, #tpu.memory_space<vmem>>, vector<1x16x128xf32>
    %316 = vector.shape_cast %315 : vector<1x16x128xf32> to vector<16x128xf32>
    %317 = vector.shape_cast %314 : vector<16x128xf32> to vector<1x16x128xf32>
    tpu.vector_store %arg11[%c0_169, %c0_170, %c0_171], %317 {strides = array<i32>} : memref<1x16x128xf32, #tpu.memory_space<vmem>>, vector<1x16x128xf32>,
    return
  }
  func.func @transform_0(%arg0: i32) -> (i32, i32) {
    %c0_i32 = arith.constant 0 : i32
    %c0_i32_0 = arith.constant 0 : i32
    %c0_i32_1 = arith.constant 0 : i32
    return %c0_i32, %c0_i32_0 : i32, i32
  }
  func.func @transform_1(%arg0: i32) -> (i32, i32) {
    %c0_i32 = arith.constant 0 : i32
    %c0_i32_0 = arith.constant 0 : i32
    %c0_i32_1 = arith.constant 0 : i32
    return %c0_i32, %c0_i32_0 : i32, i32
  }
  func.func @transform_2(%arg0: i32) -> (i32, i32) {
    %c0_i32 = arith.constant 0 : i32
    %c0_i32_0 = arith.constant 0 : i32
    %c0_i32_1 = arith.constant 0 : i32
    return %c0_i32, %c0_i32_0 : i32, i32
  }
  func.func @transform_3(%arg0: i32) -> (i32, i32) {
    %c0_i32 = arith.constant 0 : i32
    %c0_i32_0 = arith.constant 0 : i32
    %c0_i32_1 = arith.constant 0 : i32
    return %c0_i32, %c0_i32_0 : i32, i32
  }
  func.func @transform_4(%arg0: i32) -> (i32, i32, i32) {
    %c0_i32 = arith.constant 0 : i32
    %c0_i32_0 = arith.constant 0 : i32
    %c0_i32_1 = arith.constant 0 : i32
    return %arg0, %c0_i32, %c0_i32_0 : i32, i32, i32
  }
  func.func @transform_5(%arg0: i32) -> (i32, i32, i32) {
    %c0_i32 = arith.constant 0 : i32
    %c0_i32_0 = arith.constant 0 : i32
    %c0_i32_1 = arith.constant 0 : i32
    return %arg0, %c0_i32, %c0_i32_0 : i32, i32, i32
  }
  func.func @transform_6(%arg0: i32) -> (i32, i32, i32) {
    %c0_i32 = arith.constant 0 : i32
    %c0_i32_0 = arith.constant 0 : i32
    %c0_i32_1 = arith.constant 0 : i32
    return %arg0, %c0_i32, %c0_i32_0 : i32, i32, i32
  }
  func.func @transform_7(%arg0: i32) -> (i32, i32, i32) {
    %c0_i32 = arith.constant 0 : i32
    %c0_i32_0 = arith.constant 0 : i32
    %c0_i32_1 = arith.constant 0 : i32
    return %arg0, %c0_i32, %c0_i32_0 : i32, i32, i32
  }
  func.func @transform_8(%arg0: i32) -> (i32, i32, i32) {
    %c0_i32 = arith.constant 0 : i32
    %c0_i32_0 = arith.constant 0 : i32
    %c0_i32_1 = arith.constant 0 : i32
    return %arg0, %c0_i32, %c0_i32_0 : i32, i32, i32
  }
  func.func @transform_9(%arg0: i32) -> (i32, i32, i32) {
    %c0_i32 = arith.constant 0 : i32
    %c0_i32_0 = arith.constant 0 : i32
    %c0_i32_1 = arith.constant 0 : i32
    return %arg0, %c0_i32, %c0_i32_0 : i32, i32, i32
  }
  func.func @transform_10(%arg0: i32) -> (i32, i32, i32) {
    %c0_i32 = arith.constant 0 : i32
    %c0_i32_0 = arith.constant 0 : i32
    %c0_i32_1 = arith.constant 0 : i32
    return %arg0, %c0_i32, %c0_i32_0 : i32, i32, i32
  }
}

</mosaic_0001>

<llo_original>
// kernel: tpu_custom_call.1
$region0: #{tpu_custom_call.1}
  #allocation0 [shape = 'u32[]', space=smem, size = 0x4, offset = 0x4, fixed_abs, tag = 'smem constant byte address 0x4 - core index']
  #allocation1 [shape = 'u32[144,128]{1,0:T(1,128)}', space=vmem, size = 0x12000, scoped, tag = 'internal scratch']
  #allocation2 [shape = 'f32[16,8]{1,0:T(8,128)}', space=vmem, size = 0x2000, scoped, tag = 'scratch operand']
  #allocation3 [shape = 'f32[8,32]{1,0:T(8,128)}', space=vmem, size = 0x1000, scoped, tag = 'scratch operand']
  #allocation4 [shape = 'f32[4,128]{1,0:T(4,128)}', space=vmem, size = 0x800, scoped, tag = 'scratch operand']
  %s0 = inlined_call_operand.vmem [shape: f32[2,32], index: 0, kind: input, shape index: {}]
  %s1 = inlined_call_operand.vmem [shape: f32[32,128], index: 1, kind: input, shape index: {}]
  %s2 = inlined_call_operand.vmem [shape: f32[1,128], index: 2, kind: input, shape index: {}]
  %s3 = inlined_call_operand.vmem [shape: f32[2,64], index: 3, kind: input, shape index: {}]
  %s4 = inlined_call_operand.vmem [shape: f32[2,32,16], index: 4, kind: input, shape index: {}]
  %s5 = inlined_call_operand.vmem [shape: f32[2,32,1], index: 5, kind: input, shape index: {}]
  %s6 = inlined_call_operand.vmem [shape: f32[2,16,8], index: 6, kind: input, shape index: {}]
  %s7 = inlined_call_operand.vmem [shape: f32[2,16,1], index: 7, kind: input, shape index: {}]
  %s8 = inlined_call_operand.vmem [shape: f32[2,16,4], index: 8, kind: input, shape index: {}]
  %s9 = inlined_call_operand.vmem [shape: f32[2,16,1], index: 9, kind: input, shape index: {}]
  %s10 = inlined_call_operand.hbm [shape: f32[2,16,128], index: 10, kind: output, shape index: {}]
  %s11 = sld [smem:[#allocation0]]
  $region73: #{tpu_custom_call.1} parent=0
    _
  %s13 = ssub.s32 1, %s11
  %s14 = scalar_select 0, %s13, %s11
  $region1: #{tpu_custom_call.1} parent=0
    #allocation5 [shape = 'u8[16384]{0}', space=vmem, size = 0x4000, scoped, tag = 'output window, operand 0']
    #allocation6 [shape = 's32[2]{0}', space=sflag, size = 0x8, scoped, tag = 'scoped memory for tpu_custom_call.1']
    %15 = vsyncpa [#allocation6], 0
    %s16 = scalar_lea.sflag [#allocation6], 1
    %17 = vsyncpa %s16, 0
    loop: start=0, step=1, limit=4
    $region2: #{tpu_custom_call.1} parent=1 // loop_pre_header
      _
    $region3: #{tpu_custom_call.1} parent=1 // loop_header
      %s19 = sphi 0, %s23
      %p20 = scmp.ge.s32.totalorder %s19, 4
      %s27 = sphi 0, %s27
      %s29 = sphi 0, %s27
      %s30 = sphi 0, %s29
      %s44 = sphi 0, %s30
      %s48 = sphi 0, %s48
      %s50 = sphi 0, %s48
      %s51 = sphi 0, %s50
      %s65 = sphi 0, %s51
      %s69 = sphi 0, %s69
      %s71 = sphi 0, %s69
      %s72 = sphi 0, %s71
      %s86 = sphi 0, %s72
      %s90 = sphi 0, %s90
      %s92 = sphi 0, %s90
      %s93 = sphi 0, %s92
      %s107 = sphi 0, %s93
      %s113 = sphi 0, %s115
      %s116 = sphi 0, %s113
      %s117 = sphi 0, %s116
      %s133 = sphi 0, %s117
      %s139 = sphi 0, %s141
      %s142 = sphi 0, %s139
      %s143 = sphi 0, %s142
      %s159 = sphi 0, %s143
      %s165 = sphi 0, %s167
      %s168 = sphi 0, %s165
      %s169 = sphi 0, %s168
      %s185 = sphi 0, %s169
      %s191 = sphi 0, %s193
      %s194 = sphi 0, %s191
      %s195 = sphi 0, %s194
      %s211 = sphi 0, %s195
      %s217 = sphi 0, %s219
      %s220 = sphi 0, %s217
      %s221 = sphi 0, %s220
      %s237 = sphi 0, %s221
      %s243 = sphi 0, %s245
      %s246 = sphi 0, %s243
      %s247 = sphi 0, %s246
      %s263 = sphi 0, %s247
      %s269 = sphi 0, %s271
      %s272 = sphi 0, %s269
      %s273 = sphi 0, %s272
      %s289 = sphi 0, %s273
    $region4: #{tpu_custom_call.1} parent=1 // loop_header_branch
      %22 = sbr.rel (%p20) target = $region8
    $region5: #{tpu_custom_call.1} parent=1 // loop_body
      %s24 = ssub.s32 %s19, 1
      %s25 = ssub.s32 %s19, 2
      %s26 = sadd.s32 %s19, 1
      %s28 = sadd.s32 %s27, 1
      %p31 = scmp.eq.s32.totalorder %s19, 1
      %p32 = scmp.ne.s32.totalorder %s27, %s29
      %p33 = scmp.eq.s32.totalorder %s19, 0
      %p34 = por %p32, %p33
      %p35 = scmp.ne.s32.totalorder %s27, %s29
      %p36 = scmp.eq.s32.totalorder %s24, 1
      %p37 = por %p35, %p36
      %p38 = scmp.ne.s32.totalorder %s29, %s30
      %p39 = scmp.eq.s32.totalorder %s24, 0
      %p40 = por %p38, %p39
      %p41 = scmp.ne.s32.totalorder %s29, %s30
      %p42 = scmp.eq.s32.totalorder %s25, 1
      %p43 = por %p41, %p42
      %p45 = scmp.ne.s32.totalorder %s30, %s44
      %p46 = scmp.eq.s32.totalorder %s25, 0
      %p47 = por %p45, %p46
      %s49 = sadd.s32 %s48, 1
      %p52 = scmp.eq.s32.totalorder %s19, 1
      %p53 = scmp.ne.s32.totalorder %s48, %s50
      %p54 = scmp.eq.s32.totalorder %s19, 0
      %p55 = por %p53, %p54
      %p56 = scmp.ne.s32.totalorder %s48, %s50
      %p57 = scmp.eq.s32.totalorder %s24, 1
      %p58 = por %p56, %p57
      %p59 = scmp.ne.s32.totalorder %s50, %s51
      %p60 = scmp.eq.s32.totalorder %s24, 0
      %p61 = por %p59, %p60
      %p62 = scmp.ne.s32.totalorder %s50, %s51
      %p63 = scmp.eq.s32.totalorder %s25, 1
      %p64 = por %p62, %p63
      %p66 = scmp.ne.s32.totalorder %s51, %s65
      %p67 = scmp.eq.s32.totalorder %s25, 0
      %p68 = por %p66, %p67
      %s70 = sadd.s32 %s69, 1
      %p73 = scmp.eq.s32.totalorder %s19, 1
      %p74 = scmp.ne.s32.totalorder %s69, %s71
      %p75 = scmp.eq.s32.totalorder %s19, 0
      %p76 = por %p74, %p75
      %p77 = scmp.ne.s32.totalorder %s69, %s71
      %p78 = scmp.eq.s32.totalorder %s24, 1
      %p79 = por %p77, %p78
      %p80 = scmp.ne.s32.totalorder %s71, %s72
      %p81 = scmp.eq.s32.totalorder %s24, 0
      %p82 = por %p80, %p81
      %p83 = scmp.ne.s32.totalorder %s71, %s72
      %p84 = scmp.eq.s32.totalorder %s25, 1
      %p85 = por %p83, %p84
      %p87 = scmp.ne.s32.totalorder %s72, %s86
      %p88 = scmp.eq.s32.totalorder %s25, 0
      %p89 = por %p87, %p88
      %s91 = sadd.s32 %s90, 1
      %p94 = scmp.eq.s32.totalorder %s19, 1
      %p95 = scmp.ne.s32.totalorder %s90, %s92
      %p96 = scmp.eq.s32.totalorder %s19, 0
      %p97 = por %p95, %p96
      %p98 = scmp.ne.s32.totalorder %s90, %s92
      %p99 = scmp.eq.s32.totalorder %s24, 1
      %p100 = por %p98, %p99
      %p101 = scmp.ne.s32.totalorder %s92, %s93
      %p102 = scmp.eq.s32.totalorder %s24, 0
      %p103 = por %p101, %p102
      %p104 = scmp.ne.s32.totalorder %s92, %s93
      %p105 = scmp.eq.s32.totalorder %s25, 1
      %p106 = por %p104, %p105
      %p108 = scmp.ne.s32.totalorder %s93, %s107
      %p109 = scmp.eq.s32.totalorder %s25, 0
      %p110 = por %p108, %p109
      %s111 = ssub.s32 %s19, %s26
      %p112 = scmp.eq.s32.totalorder %s111, 0
      %s114 = sadd.s32 %s113, 1
      %s115 = scalar_select %p112, %s113, %s114
      %p118 = pneg %p112
      %p119 = scmp.eq.s32.totalorder %s19, 1
      %p120 = por %p118, %p119
      %p121 = scmp.ne.s32.totalorder %s113, %s116
      %p122 = scmp.eq.s32.totalorder %s19, 0
      %p123 = por %p121, %p122
      %p124 = scmp.ne.s32.totalorder %s113, %s116
      %p125 = scmp.eq.s32.totalorder %s24, 1
      %p126 = por %p124, %p125
      %p127 = scmp.ne.s32.totalorder %s116, %s117
      %p128 = scmp.eq.s32.totalorder %s24, 0
      %p129 = por %p127, %p128
      %p130 = scmp.ne.s32.totalorder %s116, %s117
      %p131 = scmp.eq.s32.totalorder %s25, 1
      %p132 = por %p130, %p131
      %p134 = scmp.ne.s32.totalorder %s117, %s133
      %p135 = scmp.eq.s32.totalorder %s25, 0
      %p136 = por %p134, %p135
      %s137 = ssub.s32 %s19, %s26
      %p138 = scmp.eq.s32.totalorder %s137, 0
      %s140 = sadd.s32 %s139, 1
      %s141 = scalar_select %p138, %s139, %s140
      %p144 = pneg %p138
      %p145 = scmp.eq.s32.totalorder %s19, 1
      %p146 = por %p144, %p145
      %p147 = scmp.ne.s32.totalorder %s139, %s142
      %p148 = scmp.eq.s32.totalorder %s19, 0
      %p149 = por %p147, %p148
      %p150 = scmp.ne.s32.totalorder %s139, %s142
      %p151 = scmp.eq.s32.totalorder %s24, 1
      %p152 = por %p150, %p151
      %p153 = scmp.ne.s32.totalorder %s142, %s143
      %p154 = scmp.eq.s32.totalorder %s24, 0
      %p155 = por %p153, %p154
      %p156 = scmp.ne.s32.totalorder %s142, %s143
      %p157 = scmp.eq.s32.totalorder %s25, 1
      %p158 = por %p156, %p157
      %p160 = scmp.ne.s32.totalorder %s143, %s159
      %p161 = scmp.eq.s32.totalorder %s25, 0
      %p162 = por %p160, %p161
      %s163 = ssub.s32 %s19, %s26
      %p164 = scmp.eq.s32.totalorder %s163, 0
      %s166 = sadd.s32 %s165, 1
      %s167 = scalar_select %p164, %s165, %s166
      %p170 = pneg %p164
      %p171 = scmp.eq.s32.totalorder %s19, 1
      %p172 = por %p170, %p171
      %p173 = scmp.ne.s32.totalorder %s165, %s168
      %p174 = scmp.eq.s32.totalorder %s19, 0
      %p175 = por %p173, %p174
      %p176 = scmp.ne.s32.totalorder %s165, %s168
      %p177 = scmp.eq.s32.totalorder %s24, 1
      %p178 = por %p176, %p177
      %p179 = scmp.ne.s32.totalorder %s168, %s169
      %p180 = scmp.eq.s32.totalorder %s24, 0
      %p181 = por %p179, %p180
      %p182 = scmp.ne.s32.totalorder %s168, %s169
      %p183 = scmp.eq.s32.totalorder %s25, 1
      %p184 = por %p182, %p183
      %p186 = scmp.ne.s32.totalorder %s169, %s185
      %p187 = scmp.eq.s32.totalorder %s25, 0
      %p188 = por %p186, %p187
      %s189 = ssub.s32 %s19, %s26
      %p190 = scmp.eq.s32.totalorder %s189, 0
      %s192 = sadd.s32 %s191, 1
      %s193 = scalar_select %p190, %s191, %s192
      %p196 = pneg %p190
      %p197 = scmp.eq.s32.totalorder %s19, 1
      %p198 = por %p196, %p197
      %p199 = scmp.ne.s32.totalorder %s191, %s194
      %p200 = scmp.eq.s32.totalorder %s19, 0
      %p201 = por %p199, %p200
      %p202 = scmp.ne.s32.totalorder %s191, %s194
      %p203 = scmp.eq.s32.totalorder %s24, 1
      %p204 = por %p202, %p203
      %p205 = scmp.ne.s32.totalorder %s194, %s195
      %p206 = scmp.eq.s32.totalorder %s24, 0
      %p207 = por %p205, %p206
      %p208 = scmp.ne.s32.totalorder %s194, %s195
      %p209 = scmp.eq.s32.totalorder %s25, 1
      %p210 = por %p208, %p209
      %p212 = scmp.ne.s32.totalorder %s195, %s211
      %p213 = scmp.eq.s32.totalorder %s25, 0
      %p214 = por %p212, %p213
      %s215 = ssub.s32 %s19, %s26
      %p216 = scmp.eq.s32.totalorder %s215, 0
      %s218 = sadd.s32 %s217, 1
      %s219 = scalar_select %p216, %s217, %s218
      %p222 = pneg %p216
      %p223 = scmp.eq.s32.totalorder %s19, 1
      %p224 = por %p222, %p223
      %p225 = scmp.ne.s32.totalorder %s217, %s220
      %p226 = scmp.eq.s32.totalorder %s19, 0
      %p227 = por %p225, %p226
      %p228 = scmp.ne.s32.totalorder %s217, %s220
      %p229 = scmp.eq.s32.totalorder %s24, 1
      %p230 = por %p228, %p229
      %p231 = scmp.ne.s32.totalorder %s220, %s221
      %p232 = scmp.eq.s32.totalorder %s24, 0
      %p233 = por %p231, %p232
      %p234 = scmp.ne.s32.totalorder %s220, %s221
      %p235 = scmp.eq.s32.totalorder %s25, 1
      %p236 = por %p234, %p235
      %p238 = scmp.ne.s32.totalorder %s221, %s237
      %p239 = scmp.eq.s32.totalorder %s25, 0
      %p240 = por %p238, %p239
      %s241 = ssub.s32 %s19, %s26
      %p242 = scmp.eq.s32.totalorder %s241, 0
      %s244 = sadd.s32 %s243, 1
      %s245 = scalar_select %p242, %s243, %s244
      %p248 = pneg %p242
      %p249 = scmp.eq.s32.totalorder %s19, 1
      %p250 = por %p248, %p249
      %p251 = scmp.ne.s32.totalorder %s243, %s246
      %p252 = scmp.eq.s32.totalorder %s19, 0
      %p253 = por %p251, %p252
      %p254 = scmp.ne.s32.totalorder %s243, %s246
      %p255 = scmp.eq.s32.totalorder %s24, 1
      %p256 = por %p254, %p255
      %p257 = scmp.ne.s32.totalorder %s246, %s247
      %p258 = scmp.eq.s32.totalorder %s24, 0
      %p259 = por %p257, %p258
      %p260 = scmp.ne.s32.totalorder %s246, %s247
      %p261 = scmp.eq.s32.totalorder %s25, 1
      %p262 = por %p260, %p261
      %p264 = scmp.ne.s32.totalorder %s247, %s263
      %p265 = scmp.eq.s32.totalorder %s25, 0
      %p266 = por %p264, %p265
      %s267 = ssub.s32 %s19, %s26
      %p268 = scmp.eq.s32.totalorder %s267, 0
      %s270 = sadd.s32 %s269, 1
      %s271 = scalar_select %p268, %s269, %s270
      %p274 = pneg %p268
      %p275 = scmp.eq.s32.totalorder %s19, 1
      %p276 = por %p274, %p275
      %p277 = scmp.ne.s32.totalorder %s269, %s272
      %p278 = scmp.eq.s32.totalorder %s19, 0
      %p279 = por %p277, %p278
      %p280 = scmp.ne.s32.totalorder %s269, %s272
      %p281 = scmp.eq.s32.totalorder %s24, 1
      %p282 = por %p280, %p281
      %p283 = scmp.ne.s32.totalorder %s272, %s273
      %p284 = scmp.eq.s32.totalorder %s24, 0
      %p285 = por %p283, %p284
      %p286 = scmp.ne.s32.totalorder %s272, %s273
      %p287 = scmp.eq.s32.totalorder %s25, 1
      %p288 = por %p286, %p287
      %p290 = scmp.ne.s32.totalorder %s273, %s289
      %p291 = scmp.eq.s32.totalorder %s25, 0
      %p292 = por %p290, %p291
      %p293 = scmp.le.s32.totalorder 1, %s19
      %p294 = scmp.lt.s32.totalorder %s19, 3
      %p295 = pnand %p293, %p294
      %p296 = pneg %p295
      // Predicated region
      $region9: #{tpu_custom_call.1} parent=5 // pred_check
        _
      $region10: #{tpu_custom_call.1} parent=5 // pred_check_branch
        %298 = sbr.rel (%p295) target = $region12
      $region11: #{tpu_custom_call.1} parent=5 // pred_region
        %s299 = ssub.s32 %s19, 1
        // Predicated region
        $region13: #{tpu_custom_call.1} parent=11 // pred_check
          %p300 = pneg %p40
        $region14: #{tpu_custom_call.1} parent=11 // pred_check_branch
          %302 = sbr.rel (%p300) target = $region16
        $region15: #{tpu_custom_call.1} parent=11 // pred_region
          _
        $region16: #{tpu_custom_call.1} parent=11 // pred_fallthru
          _
        // Predicated region
        $region17: #{tpu_custom_call.1} parent=11 // pred_check
          %p303 = pneg %p61
        $region18: #{tpu_custom_call.1} parent=11 // pred_check_branch
          %305 = sbr.rel (%p303) target = $region20
        $region19: #{tpu_custom_call.1} parent=11 // pred_region
          _
        $region20: #{tpu_custom_call.1} parent=11 // pred_fallthru
          _
        // Predicated region
        $region21: #{tpu_custom_call.1} parent=11 // pred_check
          %p306 = pneg %p82
        $region22: #{tpu_custom_call.1} parent=11 // pred_check_branch
          %308 = sbr.rel (%p306) target = $region24
        $region23: #{tpu_custom_call.1} parent=11 // pred_region
          _
        $region24: #{tpu_custom_call.1} parent=11 // pred_fallthru
          _
        // Predicated region
        $region25: #{tpu_custom_call.1} parent=11 // pred_check
          %p309 = pneg %p103
        $region26: #{tpu_custom_call.1} parent=11 // pred_check_branch
          %311 = sbr.rel (%p309) target = $region28
        $region27: #{tpu_custom_call.1} parent=11 // pred_region
          _
        $region28: #{tpu_custom_call.1} parent=11 // pred_fallthru
          _
      $region12: #{tpu_custom_call.1} parent=5 // pred_fallthru
        _
      %p312 = scmp.lt.s32.totalorder %s19, 2
      // Predicated region
      $region29: #{tpu_custom_call.1} parent=5 // pred_check
        %p313 = pneg %p312
      $region30: #{tpu_custom_call.1} parent=5 // pred_check_branch
        %315 = sbr.rel (%p313) target = $region32
      $region31: #{tpu_custom_call.1} parent=5 // pred_region
        // Predicated region
        $region33: #{tpu_custom_call.1} parent=31 // pred_check
          %p316 = pneg %p123
        $region34: #{tpu_custom_call.1} parent=31 // pred_check_branch
          %318 = sbr.rel (%p316) target = $region36
        $region35: #{tpu_custom_call.1} parent=31 // pred_region
          %p319 = scmp.lt.s32.totalorder %s19, 1
          %s320 = scalar_select %p319, %s19, 1
          %s321 = smul.addr %s320, 4
          %s322 = smul.addr %s321, 8
          %s323 = scalar_lea.vmem %s4, %s322
        $region36: #{tpu_custom_call.1} parent=31 // pred_fallthru
          _
        // Predicated region
        $region37: #{tpu_custom_call.1} parent=31 // pred_check
          %p324 = pneg %p149
        $region38: #{tpu_custom_call.1} parent=31 // pred_check_branch
          %326 = sbr.rel (%p324) target = $region40
        $region39: #{tpu_custom_call.1} parent=31 // pred_region
          %p327 = scmp.lt.s32.totalorder %s19, 1
          %s328 = scalar_select %p327, %s19, 1
          %s329 = smul.addr %s328, 4
          %s330 = smul.addr %s329, 8
          %s331 = scalar_lea.vmem %s5, %s330
        $region40: #{tpu_custom_call.1} parent=31 // pred_fallthru
          _
        // Predicated region
        $region41: #{tpu_custom_call.1} parent=31 // pred_check
          %p332 = pneg %p175
        $region42: #{tpu_custom_call.1} parent=31 // pred_check_branch
          %334 = sbr.rel (%p332) target = $region44
        $region43: #{tpu_custom_call.1} parent=31 // pred_region
          %p335 = scmp.lt.s32.totalorder %s19, 1
          %s336 = scalar_select %p335, %s19, 1
          %s337 = smul.addr %s336, 2
          %s338 = smul.addr %s337, 8
          %s339 = scalar_lea.vmem %s6, %s338
        $region44: #{tpu_custom_call.1} parent=31 // pred_fallthru
          _
        // Predicated region
        $region45: #{tpu_custom_call.1} parent=31 // pred_check
          %p340 = pneg %p201
        $region46: #{tpu_custom_call.1} parent=31 // pred_check_branch
          %342 = sbr.rel (%p340) target = $region48
        $region47: #{tpu_custom_call.1} parent=31 // pred_region
          %p343 = scmp.lt.s32.totalorder %s19, 1
          %s344 = scalar_select %p343, %s19, 1
          %s345 = smul.addr %s344, 2
          %s346 = smul.addr %s345, 8
          %s347 = scalar_lea.vmem %s7, %s346
        $region48: #{tpu_custom_call.1} parent=31 // pred_fallthru
          _
        // Predicated region
        $region49: #{tpu_custom_call.1} parent=31 // pred_check
          %p348 = pneg %p227
        $region50: #{tpu_custom_call.1} parent=31 // pred_check_branch
          %350 = sbr.rel (%p348) target = $region52
        $region51: #{tpu_custom_call.1} parent=31 // pred_region
          %p351 = scmp.lt.s32.totalorder %s19, 1
          %s352 = scalar_select %p351, %s19, 1
          %s353 = smul.addr %s352, 2
          %s354 = smul.addr %s353, 8
          %s355 = scalar_lea.vmem %s8, %s354
        $region52: #{tpu_custom_call.1} parent=31 // pred_fallthru
          _
        // Predicated region
        $region53: #{tpu_custom_call.1} parent=31 // pred_check
          %p356 = pneg %p253
        $region54: #{tpu_custom_call.1} parent=31 // pred_check_branch
          %358 = sbr.rel (%p356) target = $region56
        $region55: #{tpu_custom_call.1} parent=31 // pred_region
          %p359 = scmp.lt.s32.totalorder %s19, 1
          %s360 = scalar_select %p359, %s19, 1
          %s361 = smul.addr %s360, 2
          %s362 = smul.addr %s361, 8
          %s363 = scalar_lea.vmem %s9, %s362
        $region56: #{tpu_custom_call.1} parent=31 // pred_fallthru
          _
      $region32: #{tpu_custom_call.1} parent=5 // pred_fallthru
        _
      %p364 = scmp.le.s32.totalorder 1, %s19
      %p365 = scmp.lt.s32.totalorder %s19, 3
      %p366 = pnand %p364, %p365
      %p367 = pneg %p366
      // Predicated region
      $region57: #{tpu_custom_call.1} parent=5 // pred_check
        _
      $region58: #{tpu_custom_call.1} parent=5 // pred_check_branch
        %369 = sbr.rel (%p366) target = $region60
      $region59: #{tpu_custom_call.1} parent=5 // pred_region
        %s370 = ssub.s32 %s19, 1
        %p371 = pneg %p40
        %p372 = pneg %p37
        %p373 = pneg %p61
        %p374 = pneg %p58
        %p375 = pneg %p82
        %p376 = pneg %p79
        %p377 = pneg %p103
        %p378 = pneg %p100
        %p379 = scmp.lt.s32.totalorder %s24, 1
        %s380 = scalar_select %p379, %s24, 1
        %s381 = smul.addr %s380, 4
        %s382 = smul.addr %s381, 8
        %s383 = scalar_lea.vmem %s4, %s382
        %p384 = pneg %p129
        %p385 = pneg %p126
        %p386 = scmp.lt.s32.totalorder %s24, 1
        %s387 = scalar_select %p386, %s24, 1
        %s388 = smul.addr %s387, 4
        %s389 = smul.addr %s388, 8
        %s390 = scalar_lea.vmem %s5, %s389
        %p391 = pneg %p155
        %p392 = pneg %p152
        %p393 = scmp.lt.s32.totalorder %s24, 1
        %s394 = scalar_select %p393, %s24, 1
        %s395 = smul.addr %s394, 2
        %s396 = smul.addr %s395, 8
        %s397 = scalar_lea.vmem %s6, %s396
        %p398 = pneg %p181
        %p399 = pneg %p178
        %p400 = scmp.lt.s32.totalorder %s24, 1
        %s401 = scalar_select %p400, %s24, 1
        %s402 = smul.addr %s401, 2
        %s403 = smul.addr %s402, 8
        %s404 = scalar_lea.vmem %s7, %s403
        %p405 = pneg %p207
        %p406 = pneg %p204
        %p407 = scmp.lt.s32.totalorder %s24, 1
        %s408 = scalar_select %p407, %s24, 1
        %s409 = smul.addr %s408, 2
        %s410 = smul.addr %s409, 8
        %s411 = scalar_lea.vmem %s8, %s410
        %p412 = pneg %p233
        %p413 = pneg %p230
        %p414 = scmp.lt.s32.totalorder %s24, 1
        %s415 = scalar_select %p414, %s24, 1
        %s416 = smul.addr %s415, 2
        %s417 = smul.addr %s416, 8
        %s418 = scalar_lea.vmem %s9, %s417
        %p419 = pneg %p259
        %p420 = pneg %p256
        %p421 = pneg %p285
        %p422 = pneg %p282
        %s423 = sand.u32 %s272, 1
        %s424 = scalar_lea.sflag [#allocation6], %s423
        %s425 = sand.u32 %s272, 1
        %s426 = smul.addr %s425, 16
        %s427 = scalar_lea.vmem [#allocation5], %s426
        %p428 = scmp.lt.s32.totalorder %s24, 1
        %s429 = scalar_select %p428, %s24, 1
        %s430 = smul.addr %s429, 4
        %s431 = smul.addr %s430, 8
        %s432 = scalar_lea.vmem %s4, %s431
        %p433 = scmp.lt.s32.totalorder %s24, 1
        %s434 = scalar_select %p433, %s24, 1
        %s435 = smul.addr %s434, 4
        %s436 = smul.addr %s435, 8
        %s437 = scalar_lea.vmem %s5, %s436
        %p438 = scmp.lt.s32.totalorder %s24, 1
        %s439 = scalar_select %p438, %s24, 1
        %s440 = smul.addr %s439, 2
        %s441 = smul.addr %s440, 8
        %s442 = scalar_lea.vmem %s6, %s441
        %p443 = scmp.lt.s32.totalorder %s24, 1
        %s444 = scalar_select %p443, %s24, 1
        %s445 = smul.addr %s444, 2
        %s446 = smul.addr %s445, 8
        %s447 = scalar_lea.vmem %s7, %s446
        %p448 = scmp.lt.s32.totalorder %s24, 1
        %s449 = scalar_select %p448, %s24, 1
        %s450 = smul.addr %s449, 2
        %s451 = smul.addr %s450, 8
        %s452 = scalar_lea.vmem %s8, %s451
        %p453 = scmp.lt.s32.totalorder %s24, 1
        %s454 = scalar_select %p453, %s24, 1
        %s455 = smul.addr %s454, 2
        %s456 = smul.addr %s455, 8
        %s457 = scalar_lea.vmem %s9, %s456
        %v458 = vld [vmem:[%s0] sm:$0x3]
        %v459 = vld [vmem:[%s1] sm:$0xff]
        %v460 = vld [vmem:[%s1 + $0x8] sm:$0xff]
        %v461 = vld [vmem:[%s1 + $0x10] sm:$0xff]
        %v462 = vld [vmem:[%s1 + $0x18] sm:$0xff]
        %v463 = vld [vmem:[%s2] sm:$0x1]
        %v465 = vlaneseq
        %v466 = vshrl.u32 %v465, 7
        %v467 = vsub.s32 0, %v466
        %v468 = vrot.slane %v463, %v467
        %vm470 = vcmask 261120
        %v472 = vsel %vm470, %v458, 0
        %474 = vmatprep.subr.mxu0 0.0
        %475 = vmatpush1.msra.mxu0 %v459
        %476 = vmatprep.subr.mxu0 0.0
        %477 = vmatpush1.msra.mxu0 %v460
        %478 = vmatprep.subr.mxu0 0.0
        %479 = vmatpush1.msra.mxu0 %v461
        %480 = vmatprep.subr.mxu0 0.0
        %481 = vmatpush1.msra.mxu0 %v462
        %482 = vmatprep.subr.mxu0 0.0
        %483 = vmatpush1.msra.mxu0 0.0
        %484 = vmatprep.subr.mxu0 0.0
        %485 = vmatpush1.msra.mxu0 0.0
        %486 = vmatprep.subr.mxu0 0.0
        %487 = vmatpush1.msra.mxu0 0.0
        %488 = vmatprep.subr.mxu0 0.0
        %489 = vmatpush1.msra.mxu0 0.0
        %490 = vmatprep.subr.mxu0 0.0
        %491 = vmatpush1.msra.mxu0 0.0
        %492 = vmatprep.subr.mxu0 0.0
        %493 = vmatpush1.msra.mxu0 0.0
        %494 = vmatprep.subr.mxu0 0.0
        %495 = vmatpush1.msra.mxu0 0.0
        %496 = vmatprep.subr.mxu0 0.0
        %497 = vmatpush1.msra.mxu0 0.0
        %498 = vmatprep.subr.mxu0 0.0
        %499 = vmatpush1.msra.mxu0 0.0
        %500 = vmatprep.subr.mxu0 0.0
        %501 = vmatpush1.msra.mxu0 0.0
        %502 = vmatprep.subr.mxu0 0.0
        %503 = vmatpush1.msra.mxu0 0.0
        %504 = vmatprep.subr.mxu0 0.0
        %505 = vmatpush1.msra.mxu0 0.0
        %506 = vmatprep.subr.mxu0 0.0
        %507 = vmatpush1.msra.mxu0 0.0
        %508 = vmatprep.subr.mxu0 0.0
        %509 = vmatpush1.msra.mxu0 0.0
        %510 = vmatprep.subr.mxu0 0.0
        %511 = vmatpush1.msra.mxu0 0.0
        %512 = vmatprep.subr.mxu0 0.0
        %513 = vmatpush1.msra.mxu0 0.0
        %514 = vmatprep.subr.mxu0 0.0
        %515 = vmatpush1.msra.mxu0 0.0
        %516 = vmatprep.subr.mxu0 0.0
        %517 = vmatpush1.msra.mxu0 0.0
        %518 = vmatprep.subr.mxu0 0.0
        %519 = vmatpush1.msra.mxu0 0.0
        %520 = vmatprep.subr.mxu0 0.0
        %521 = vmatpush1.msra.mxu0 0.0
        %522 = vmatprep.subr.mxu0 0.0
        %523 = vmatpush1.msra.mxu0 0.0
        %524 = vmatprep.subr.mxu0 0.0
        %525 = vmatpush1.msra.mxu0 0.0
        %526 = vmatprep.subr.mxu0 0.0
        %527 = vmatpush1.msra.mxu0 0.0
        %528 = vmatprep.subr.mxu0 0.0
        %529 = vmatpush1.msra.mxu0 0.0
        %530 = vmatprep.subr.mxu0 0.0
        %531 = vmatpush1.msra.mxu0 0.0
        %532 = vmatprep.subr.mxu0 0.0
        %533 = vmatpush1.msra.mxu0 0.0
        %534 = vmatprep.subr.mxu0 0.0
        %535 = vmatpush1.msra.mxu0 0.0
        %536 = vmatprep.subr.mxu0 0.0
        %537 = vmatpush1.msra.mxu0 0.0
        %538 = vmatprep.mubr.f32.mxu0 0.0
        %539 = vmatmul.mubr.f32.gmra.mrb[0].mxu0 %v472
        %v540 = vpop.f32.mrb[0].mxu0
        %v541 = vadd.f32 %v468, %v540
        %v542 = vpop.f32.mrb[0].mxu0
        %543 = vdwg.mxu0
        %v544 = vmul.f32 %v541, 0.5
        %v545 = vrcp.pop 1.4142135
        %v546 = vmul.f32 %v541, %v545
        %v547 = vand.u32 2147483647, %v546
        %v548 = vmul.f32 %v547, 0.3275911
        %v549 = vadd.f32 %v548, 1.0
        %v550 = vrcp.pop %v549
        %v551 = vmul.f32 1.0, %v550
        %v552 = vmul.f32 %v551, 1.0614054
        %v553 = vadd.f32 %v552, -1.4531521
        %v554 = vmul.f32 %v551, %v553
        %v555 = vadd.f32 %v554, 1.4214138
        %v556 = vmul.f32 %v551, %v555
        %v557 = vadd.f32 %v556, -0.28449672
        %v558 = vmul.f32 %v551, %v557
        %v559 = vadd.f32 %v558, 0.2548296
        %v560 = vmul.f32 %v551, %v559
        %v561 = vsub.f32 0.0, %v547
        %v562 = vmul.f32 %v561, %v547
        %v563 = vmul.f32 %v562, 1.442695
        %v564 = vpow.pop %v563
        %v565 = vmul.f32 %v560, %v564
        %v566 = vsub.f32 1.0, %v565
        %vm567 = vcmp.ge.f32.partialorder %v546, 0.0
        %v568 = vsub.f32 0.0, %v566
        %v569 = vsel %vm567, %v566, %v568
        %v570 = vadd.f32 %v569, 1.0
        %v571 = vmul.f32 %v544, %v570
        %v572 = vld [vmem:[%s3] sm:$0x3]
        %574 = vrot.lane.b32.xlu0 %v571, 64
        %v575 = vpop.permute.xlu0 %574
        %v577 = vmul.f32 %v572, %v575
        %v578 = vadd.f32 %v571, %v577
        %vm579 = vcmask 24576
        %580 = vst.msk [vmem:[#allocation2] sm:$0x1] %vm579, %v578
        %582 = vrot.lane.b32.xlu0 %v578, 124
        %v583 = vpop.permute.xlu0 %582
        %585 = vst.msk [vmem:[#allocation2 + $0x1] sm:$0x1] %vm579, %v583
        %586 = vrot.lane.b32.xlu0 %v578, 120
        %v587 = vpop.permute.xlu0 %586
        %589 = vst.msk [vmem:[#allocation2 + $0x2] sm:$0x1] %vm579, %v587
        %590 = vrot.lane.b32.xlu0 %v578, 116
        %v591 = vpop.permute.xlu0 %590
        %593 = vst.msk [vmem:[#allocation2 + $0x3] sm:$0x1] %vm579, %v591
        %594 = vrot.lane.b32.xlu0 %v578, 112
        %v595 = vpop.permute.xlu0 %594
        %597 = vst.msk [vmem:[#allocation2 + $0x4] sm:$0x1] %vm579, %v595
        %598 = vrot.lane.b32.xlu0 %v578, 108
        %v599 = vpop.permute.xlu0 %598
        %601 = vst.msk [vmem:[#allocation2 + $0x5] sm:$0x1] %vm579, %v599
        %602 = vrot.lane.b32.xlu0 %v578, 104
        %v603 = vpop.permute.xlu0 %602
        %605 = vst.msk [vmem:[#allocation2 + $0x6] sm:$0x1] %vm579, %v603
        %606 = vrot.lane.b32.xlu0 %v578, 100
        %v607 = vpop.permute.xlu0 %606
        %609 = vst.msk [vmem:[#allocation2 + $0x7] sm:$0x1] %vm579, %v607
        %610 = vrot.lane.b32.xlu0 %v578, 96
        %v611 = vpop.permute.xlu0 %610
        %613 = vst.msk [vmem:[#allocation2 + $0x8] sm:$0x1] %vm579, %v611
        %614 = vrot.lane.b32.xlu0 %v578, 92
        %v615 = vpop.permute.xlu0 %614
        %617 = vst.msk [vmem:[#allocation2 + $0x9] sm:$0x1] %vm579, %v615
        %618 = vrot.lane.b32.xlu0 %v578, 88
        %v619 = vpop.permute.xlu0 %618
        %621 = vst.msk [vmem:[#allocation2 + $0xa] sm:$0x1] %vm579, %v619
        %622 = vrot.lane.b32.xlu0 %v578, 84
        %v623 = vpop.permute.xlu0 %622
        %625 = vst.msk [vmem:[#allocation2 + $0xb] sm:$0x1] %vm579, %v623
        %626 = vrot.lane.b32.xlu0 %v578, 80
        %v627 = vpop.permute.xlu0 %626
        %629 = vst.msk [vmem:[#allocation2 + $0xc] sm:$0x1] %vm579, %v627
        %630 = vrot.lane.b32.xlu0 %v578, 76
        %v631 = vpop.permute.xlu0 %630
        %633 = vst.msk [vmem:[#allocation2 + $0xd] sm:$0x1] %vm579, %v631
        %634 = vrot.lane.b32.xlu0 %v578, 72
        %v635 = vpop.permute.xlu0 %634
        %637 = vst.msk [vmem:[#allocation2 + $0xe] sm:$0x1] %vm579, %v635
        %638 = vrot.lane.b32.xlu0 %v578, 68
        %v639 = vpop.permute.xlu0 %638
        %641 = vst.msk [vmem:[#allocation2 + $0xf] sm:$0x1] %vm579, %v639
        %642 = vrot.lane.b32.xlu0 %v578, 4
        %v643 = vpop.permute.xlu0 %642
        %vm645 = vcmask 58401
        %646 = vst.msk [vmem:[#allocation2 - $0x1] sm:$0x2] %vm645, %v643
        %647 = vst.msk [vmem:[#allocation2] sm:$0x2] %vm645, %v578
        %648 = vst.msk [vmem:[#allocation2 + $0x1] sm:$0x2] %vm645, %v583
        %649 = vst.msk [vmem:[#allocation2 + $0x2] sm:$0x2] %vm645, %v587
        %650 = vst.msk [vmem:[#allocation2 + $0x3] sm:$0x2] %vm645, %v591
        %651 = vst.msk [vmem:[#allocation2 + $0x4] sm:$0x2] %vm645, %v595
        %652 = vst.msk [vmem:[#allocation2 + $0x5] sm:$0x2] %vm645, %v599
        %653 = vst.msk [vmem:[#allocation2 + $0x6] sm:$0x2] %vm645, %v603
        %654 = vst.msk [vmem:[#allocation2 + $0x7] sm:$0x2] %vm645, %v607
        %655 = vst.msk [vmem:[#allocation2 + $0x8] sm:$0x2] %vm645, %v611
        %656 = vst.msk [vmem:[#allocation2 + $0x9] sm:$0x2] %vm645, %v615
        %657 = vst.msk [vmem:[#allocation2 + $0xa] sm:$0x2] %vm645, %v619
        %658 = vst.msk [vmem:[#allocation2 + $0xb] sm:$0x2] %vm645, %v623
        %659 = vst.msk [vmem:[#allocation2 + $0xc] sm:$0x2] %vm645, %v627
        %660 = vst.msk [vmem:[#allocation2 + $0xd] sm:$0x2] %vm645, %v631
        %661 = vst.msk [vmem:[#allocation2 + $0xe] sm:$0x2] %vm645, %v635
        %v662 = vld [vmem:[%s432] sm:$0xff]
        %v663 = vld [vmem:[%s432 + $0x8] sm:$0xff]
        %v664 = vld [vmem:[%s432 + $0x10] sm:$0xff]
        %v665 = vld [vmem:[%s432 + $0x18] sm:$0xff]
        %v666 = vld [vmem:[#allocation2] sm:$0xff]
        %v667 = vld [vmem:[#allocation2 + $0x8] sm:$0xff]
        %v668 = vld [vmem:[%s437] sm:$0xff]
        %v669 = vld [vmem:[%s437 + $0x8] sm:$0xff]
        %v670 = vld [vmem:[%s437 + $0x10] sm:$0xff]
        %v671 = vld [vmem:[%s437 + $0x18] sm:$0xff]
        %673 = vset.pattern.permute.xlu0 0
        %674 = vperm.xlu0 %673, %v668
        %v675 = vpop.permute.xlu0 %674
        %678 = vset.pattern.permute.xlu0 0
        %679 = vperm.xlu0 %678, %v669
        %v680 = vpop.permute.xlu0 %679
        %683 = vset.pattern.permute.xlu0 0
        %684 = vperm.xlu0 %683, %v670
        %v685 = vpop.permute.xlu0 %684
        %688 = vset.pattern.permute.xlu0 0
        %689 = vperm.xlu0 %688, %v671
        %v690 = vpop.permute.xlu0 %689
        %vm692 = vcmask 130048
        %v694 = vsel %vm692, %v662, 0
        %v697 = vsel %vm692, %v663, 0
        %v700 = vsel %vm692, %v664, 0
        %v703 = vsel %vm692, %v665, 0
        %705 = vmatprep.subr.mxu0 0.0
        %706 = vmatpush1.msra.mxu0 %v666
        %707 = vmatprep.subr.mxu0 0.0
        %708 = vmatpush1.msra.mxu0 %v667
        %709 = vmatprep.subr.mxu0 0.0
        %710 = vmatpush1.msra.mxu0 0.0
        %711 = vmatprep.subr.mxu0 0.0
        %712 = vmatpush1.msra.mxu0 0.0
        %713 = vmatprep.subr.mxu0 0.0
        %714 = vmatpush1.msra.mxu0 0.0
        %715 = vmatprep.subr.mxu0 0.0
        %716 = vmatpush1.msra.mxu0 0.0
        %717 = vmatprep.subr.mxu0 0.0
        %718 = vmatpush1.msra.mxu0 0.0
        %719 = vmatprep.subr.mxu0 0.0
        %720 = vmatpush1.msra.mxu0 0.0
        %721 = vmatprep.subr.mxu0 0.0
        %722 = vmatpush1.msra.mxu0 0.0
        %723 = vmatprep.subr.mxu0 0.0
        %724 = vmatpush1.msra.mxu0 0.0
        %725 = vmatprep.subr.mxu0 0.0
        %726 = vmatpush1.msra.mxu0 0.0
        %727 = vmatprep.subr.mxu0 0.0
        %728 = vmatpush1.msra.mxu0 0.0
        %729 = vmatprep.subr.mxu0 0.0
        %730 = vmatpush1.msra.mxu0 0.0
        %731 = vmatprep.subr.mxu0 0.0
        %732 = vmatpush1.msra.mxu0 0.0
        %733 = vmatprep.subr.mxu0 0.0
        %734 = vmatpush1.msra.mxu0 0.0
        %735 = vmatprep.subr.mxu0 0.0
        %736 = vmatpush1.msra.mxu0 0.0
        %737 = vmatprep.subr.mxu0 0.0
        %738 = vmatpush1.msra.mxu0 0.0
        %739 = vmatprep.subr.mxu0 0.0
        %740 = vmatpush1.msra.mxu0 0.0
        %741 = vmatprep.subr.mxu0 0.0
        %742 = vmatpush1.msra.mxu0 0.0
        %743 = vmatprep.subr.mxu0 0.0
        %744 = vmatpush1.msra.mxu0 0.0
        %745 = vmatprep.subr.mxu0 0.0
        %746 = vmatpush1.msra.mxu0 0.0
        %747 = vmatprep.subr.mxu0 0.0
        %748 = vmatpush1.msra.mxu0 0.0
        %749 = vmatprep.subr.mxu0 0.0
        %750 = vmatpush1.msra.mxu0 0.0
        %751 = vmatprep.subr.mxu0 0.0
        %752 = vmatpush1.msra.mxu0 0.0
        %753 = vmatprep.subr.mxu0 0.0
        %754 = vmatpush1.msra.mxu0 0.0
        %755 = vmatprep.subr.mxu0 0.0
        %756 = vmatpush1.msra.mxu0 0.0
        %757 = vmatprep.subr.mxu0 0.0
        %758 = vmatpush1.msra.mxu0 0.0
        %759 = vmatprep.subr.mxu0 0.0
        %760 = vmatpush1.msra.mxu0 0.0
        %761 = vmatprep.subr.mxu0 0.0
        %762 = vmatpush1.msra.mxu0 0.0
        %763 = vmatprep.subr.mxu0 0.0
        %764 = vmatpush1.msra.mxu0 0.0
        %765 = vmatprep.subr.mxu0 0.0
        %766 = vmatpush1.msra.mxu0 0.0
        %767 = vmatprep.subr.mxu0 0.0
        %768 = vmatpush1.msra.mxu0 0.0
        %769 = vmatprep.mubr.f32.mxu0 0.0
        %770 = vmatmul.mubr.f32.gmra.mrb[0].mxu0 %v694
        %v771 = vpop.f32.mrb[0].mxu0
        %v772 = vadd.f32 %v675, %v771
        %v773 = vpop.f32.mrb[0].mxu0
        %774 = vmatprep.mubr.f32.mxu0 0.0
        %775 = vmatmul.mubr.f32.gmra.mrb[0].mxu0 %v697
        %v776 = vpop.f32.mrb[0].mxu0
        %v777 = vadd.f32 %v680, %v776
        %v778 = vpop.f32.mrb[0].mxu0
        %779 = vmatprep.mubr.f32.mxu0 0.0
        %780 = vmatmul.mubr.f32.gmra.mrb[0].mxu0 %v700
        %v781 = vpop.f32.mrb[0].mxu0
        %v782 = vadd.f32 %v685, %v781
        %v783 = vpop.f32.mrb[0].mxu0
        %784 = vmatprep.mubr.f32.mxu0 0.0
        %785 = vmatmul.mubr.f32.gmra.mrb[0].mxu0 %v703
        %v786 = vpop.f32.mrb[0].mxu0
        %v787 = vadd.f32 %v690, %v786
        %v788 = vpop.f32.mrb[0].mxu0
        %789 = vdwg.mxu0
        %v790 = vmul.f32 %v772, 0.5
        %v791 = vmul.f32 %v777, 0.5
        %v792 = vmul.f32 %v782, 0.5
        %v793 = vmul.f32 %v787, 0.5
        %v794 = vmul.f32 %v772, %v545
        %v795 = vmul.f32 %v777, %v545
        %v796 = vmul.f32 %v782, %v545
        %v797 = vmul.f32 %v787, %v545
        %v798 = vand.u32 2147483647, %v794
        %v799 = vand.u32 2147483647, %v795
        %v800 = vand.u32 2147483647, %v796
        %v801 = vand.u32 2147483647, %v797
        %v802 = vmul.f32 %v798, 0.3275911
        %v803 = vmul.f32 %v799, 0.3275911
        %v804 = vmul.f32 %v800, 0.3275911
        %v805 = vmul.f32 %v801, 0.3275911
        %v806 = vadd.f32 %v802, 1.0
        %v807 = vadd.f32 %v803, 1.0
        %v808 = vadd.f32 %v804, 1.0
        %v809 = vadd.f32 %v805, 1.0
        %v810 = vrcp.pop %v806
        %v811 = vmul.f32 1.0, %v810
        %v812 = vrcp.pop %v807
        %v813 = vmul.f32 1.0, %v812
        %v814 = vrcp.pop %v808
        %v815 = vmul.f32 1.0, %v814
        %v816 = vrcp.pop %v809
        %v817 = vmul.f32 1.0, %v816
        %v818 = vmul.f32 %v811, 1.0614054
        %v819 = vmul.f32 %v813, 1.0614054
        %v820 = vmul.f32 %v815, 1.0614054
        %v821 = vmul.f32 %v817, 1.0614054
        %v822 = vadd.f32 %v818, -1.4531521
        %v823 = vadd.f32 %v819, -1.4531521
        %v824 = vadd.f32 %v820, -1.4531521
        %v825 = vadd.f32 %v821, -1.4531521
        %v826 = vmul.f32 %v811, %v822
        %v827 = vmul.f32 %v813, %v823
        %v828 = vmul.f32 %v815, %v824
        %v829 = vmul.f32 %v817, %v825
        %v830 = vadd.f32 %v826, 1.4214138
        %v831 = vadd.f32 %v827, 1.4214138
        %v832 = vadd.f32 %v828, 1.4214138
        %v833 = vadd.f32 %v829, 1.4214138
        %v834 = vmul.f32 %v811, %v830
        %v835 = vmul.f32 %v813, %v831
        %v836 = vmul.f32 %v815, %v832
        %v837 = vmul.f32 %v817, %v833
        %v838 = vadd.f32 %v834, -0.28449672
        %v839 = vadd.f32 %v835, -0.28449672
        %v840 = vadd.f32 %v836, -0.28449672
        %v841 = vadd.f32 %v837, -0.28449672
        %v842 = vmul.f32 %v811, %v838
        %v843 = vmul.f32 %v813, %v839
        %v844 = vmul.f32 %v815, %v840
        %v845 = vmul.f32 %v817, %v841
        %v846 = vadd.f32 %v842, 0.2548296
        %v847 = vadd.f32 %v843, 0.2548296
        %v848 = vadd.f32 %v844, 0.2548296
        %v849 = vadd.f32 %v845, 0.2548296
        %v850 = vmul.f32 %v811, %v846
        %v851 = vmul.f32 %v813, %v847
        %v852 = vmul.f32 %v815, %v848
        %v853 = vmul.f32 %v817, %v849
        %v854 = vsub.f32 0.0, %v798
        %v855 = vsub.f32 0.0, %v799
        %v856 = vsub.f32 0.0, %v800
        %v857 = vsub.f32 0.0, %v801
        %v858 = vmul.f32 %v854, %v798
        %v859 = vmul.f32 %v855, %v799
        %v860 = vmul.f32 %v856, %v800
        %v861 = vmul.f32 %v857, %v801
        %v862 = vmul.f32 %v858, 1.442695
        %v863 = vpow.pop %v862
        %v864 = vmul.f32 %v859, 1.442695
        %v865 = vpow.pop %v864
        %v866 = vmul.f32 %v860, 1.442695
        %v867 = vpow.pop %v866
        %v868 = vmul.f32 %v861, 1.442695
        %v869 = vpow.pop %v868
        %v870 = vmul.f32 %v850, %v863
        %v871 = vmul.f32 %v851, %v865
        %v872 = vmul.f32 %v852, %v867
        %v873 = vmul.f32 %v853, %v869
        %v874 = vsub.f32 1.0, %v870
        %v875 = vsub.f32 1.0, %v871
        %v876 = vsub.f32 1.0, %v872
        %v877 = vsub.f32 1.0, %v873
        %vm878 = vcmp.ge.f32.partialorder %v794, 0.0
        %vm879 = vcmp.ge.f32.partialorder %v795, 0.0
        %vm880 = vcmp.ge.f32.partialorder %v796, 0.0
        %vm881 = vcmp.ge.f32.partialorder %v797, 0.0
        %v882 = vsub.f32 0.0, %v874
        %v883 = vsub.f32 0.0, %v875
        %v884 = vsub.f32 0.0, %v876
        %v885 = vsub.f32 0.0, %v877
        %v886 = vsel %vm878, %v874, %v882
        %v887 = vsel %vm879, %v875, %v883
        %v888 = vsel %vm880, %v876, %v884
        %v889 = vsel %vm881, %v877, %v885
        %v890 = vadd.f32 %v886, 1.0
        %v891 = vadd.f32 %v887, 1.0
        %v892 = vadd.f32 %v888, 1.0
        %v893 = vadd.f32 %v889, 1.0
        %v894 = vmul.f32 %v790, %v890
        %v895 = vmul.f32 %v791, %v891
        %v896 = vmul.f32 %v792, %v892
        %v897 = vmul.f32 %v793, %v893
        %vm898 = vcmask 64512
        %899 = vst.msk [vmem:[#allocation3] sm:$0xff] %vm898, %v894
        %901 = vrot.lane.b32.xlu0 %v895, 8
        %v902 = vpop.permute.xlu0 %901
        %vm904 = vcmask 130112
        %905 = vst.msk [vmem:[#allocation3] sm:$0xff] %vm904, %v902
        %907 = vrot.lane.b32.xlu0 %v896, 16
        %v908 = vpop.permute.xlu0 %907
        %vm910 = vcmask 195712
        %911 = vst.msk [vmem:[#allocation3] sm:$0xff] %vm910, %v908
        %913 = vrot.lane.b32.xlu0 %v897, 24
        %v914 = vpop.permute.xlu0 %913
        %vm916 = vcmask 261312
        %917 = vst.msk [vmem:[#allocation3] sm:$0xff] %vm916, %v914
        %v918 = vld [vmem:[%s442] sm:$0xff]
        %v919 = vld [vmem:[%s442 + $0x8] sm:$0xff]
        %v920 = vld [vmem:[#allocation3] sm:$0xff]
        %v921 = vld [vmem:[%s447] sm:$0xff]
        %v922 = vld [vmem:[%s447 + $0x8] sm:$0xff]
        %924 = vset.pattern.permute.xlu0 0
        %925 = vperm.xlu0 %924, %v921
        %v926 = vpop.permute.xlu0 %925
        %929 = vset.pattern.permute.xlu0 0
        %930 = vperm.xlu0 %929, %v922
        %v931 = vpop.permute.xlu0 %930
        %v934 = vsel %vm898, %v918, 0
        %v937 = vsel %vm898, %v919, 0
        %939 = vmatprep.subr.mxu0 0.0
        %940 = vmatpush1.msra.mxu0 %v920
        %941 = vmatprep.subr.mxu0 0.0
        %942 = vmatpush1.msra.mxu0 0.0
        %943 = vmatprep.subr.mxu0 0.0
        %944 = vmatpush1.msra.mxu0 0.0
        %945 = vmatprep.subr.mxu0 0.0
        %946 = vmatpush1.msra.mxu0 0.0
        %947 = vmatprep.subr.mxu0 0.0
        %948 = vmatpush1.msra.mxu0 0.0
        %949 = vmatprep.subr.mxu0 0.0
        %950 = vmatpush1.msra.mxu0 0.0
        %951 = vmatprep.subr.mxu0 0.0
        %952 = vmatpush1.msra.mxu0 0.0
        %953 = vmatprep.subr.mxu0 0.0
        %954 = vmatpush1.msra.mxu0 0.0
        %955 = vmatprep.subr.mxu0 0.0
        %956 = vmatpush1.msra.mxu0 0.0
        %957 = vmatprep.subr.mxu0 0.0
        %958 = vmatpush1.msra.mxu0 0.0
        %959 = vmatprep.subr.mxu0 0.0
        %960 = vmatpush1.msra.mxu0 0.0
        %961 = vmatprep.subr.mxu0 0.0
        %962 = vmatpush1.msra.mxu0 0.0
        %963 = vmatprep.subr.mxu0 0.0
        %964 = vmatpush1.msra.mxu0 0.0
        %965 = vmatprep.subr.mxu0 0.0
        %966 = vmatpush1.msra.mxu0 0.0
        %967 = vmatprep.subr.mxu0 0.0
        %968 = vmatpush1.msra.mxu0 0.0
        %969 = vmatprep.subr.mxu0 0.0
        %970 = vmatpush1.msra.mxu0 0.0
        %971 = vmatprep.subr.mxu0 0.0
        %972 = vmatpush1.msra.mxu0 0.0
        %973 = vmatprep.subr.mxu0 0.0
        %974 = vmatpush1.msra.mxu0 0.0
        %975 = vmatprep.subr.mxu0 0.0
        %976 = vmatpush1.msra.mxu0 0.0
        %977 = vmatprep.subr.mxu0 0.0
        %978 = vmatpush1.msra.mxu0 0.0
        %979 = vmatprep.subr.mxu0 0.0
        %980 = vmatpush1.msra.mxu0 0.0
        %981 = vmatprep.subr.mxu0 0.0
        %982 = vmatpush1.msra.mxu0 0.0
        %983 = vmatprep.subr.mxu0 0.0
        %984 = vmatpush1.msra.mxu0 0.0
        %985 = vmatprep.subr.mxu0 0.0
        %986 = vmatpush1.msra.mxu0 0.0
        %987 = vmatprep.subr.mxu0 0.0
        %988 = vmatpush1.msra.mxu0 0.0
        %989 = vmatprep.subr.mxu0 0.0
        %990 = vmatpush1.msra.mxu0 0.0
        %991 = vmatprep.subr.mxu0 0.0
        %992 = vmatpush1.msra.mxu0 0.0
        %993 = vmatprep.subr.mxu0 0.0
        %994 = vmatpush1.msra.mxu0 0.0
        %995 = vmatprep.subr.mxu0 0.0
        %996 = vmatpush1.msra.mxu0 0.0
        %997 = vmatprep.subr.mxu0 0.0
        %998 = vmatpush1.msra.mxu0 0.0
        %999 = vmatprep.subr.mxu0 0.0
        %1000 = vmatpush1.msra.mxu0 0.0
        %1001 = vmatprep.subr.mxu0 0.0
        %1002 = vmatpush1.msra.mxu0 0.0
        %1003 = vmatprep.mubr.f32.mxu0 0.0
        %1004 = vmatmul.mubr.f32.gmra.mrb[0].mxu0 %v934
        %v1005 = vpop.f32.mrb[0].mxu0
        %v1006 = vadd.f32 %v926, %v1005
        %v1007 = vpop.f32.mrb[0].mxu0
        %1008 = vmatprep.mubr.f32.mxu0 0.0
        %1009 = vmatmul.mubr.f32.gmra.mrb[0].mxu0 %v937
        %v1010 = vpop.f32.mrb[0].mxu0
        %v1011 = vadd.f32 %v931, %v1010
        %v1012 = vpop.f32.mrb[0].mxu0
        %1013 = vdwg.mxu0
        %v1014 = vmul.f32 %v1006, 0.5
        %v1015 = vmul.f32 %v1011, 0.5
        %v1016 = vmul.f32 %v1006, %v545
        %v1017 = vmul.f32 %v1011, %v545
        %v1018 = vand.u32 2147483647, %v1016
        %v1019 = vand.u32 2147483647, %v1017
        %v1020 = vmul.f32 %v1018, 0.3275911
        %v1021 = vmul.f32 %v1019, 0.3275911
        %v1022 = vadd.f32 %v1020, 1.0
        %v1023 = vadd.f32 %v1021, 1.0
        %v1024 = vrcp.pop %v1022
        %v1025 = vmul.f32 1.0, %v1024
        %v1026 = vrcp.pop %v1023
        %v1027 = vmul.f32 1.0, %v1026
        %v1028 = vmul.f32 %v1025, 1.0614054
        %v1029 = vmul.f32 %v1027, 1.0614054
        %v1030 = vadd.f32 %v1028, -1.4531521
        %v1031 = vadd.f32 %v1029, -1.4531521
        %v1032 = vmul.f32 %v1025, %v1030
        %v1033 = vmul.f32 %v1027, %v1031
        %v1034 = vadd.f32 %v1032, 1.4214138
        %v1035 = vadd.f32 %v1033, 1.4214138
        %v1036 = vmul.f32 %v1025, %v1034
        %v1037 = vmul.f32 %v1027, %v1035
        %v1038 = vadd.f32 %v1036, -0.28449672
        %v1039 = vadd.f32 %v1037, -0.28449672
        %v1040 = vmul.f32 %v1025, %v1038
        %v1041 = vmul.f32 %v1027, %v1039
        %v1042 = vadd.f32 %v1040, 0.2548296
        %v1043 = vadd.f32 %v1041, 0.2548296
        %v1044 = vmul.f32 %v1025, %v1042
        %v1045 = vmul.f32 %v1027, %v1043
        %v1046 = vsub.f32 0.0, %v1018
        %v1047 = vsub.f32 0.0, %v1019
        %v1048 = vmul.f32 %v1046, %v1018
        %v1049 = vmul.f32 %v1047, %v1019
        %v1050 = vmul.f32 %v1048, 1.442695
        %v1051 = vpow.pop %v1050
        %v1052 = vmul.f32 %v1049, 1.442695
        %v1053 = vpow.pop %v1052
        %v1054 = vmul.f32 %v1044, %v1051
        %v1055 = vmul.f32 %v1045, %v1053
        %v1056 = vsub.f32 1.0, %v1054
        %v1057 = vsub.f32 1.0, %v1055
        %vm1058 = vcmp.ge.f32.partialorder %v1016, 0.0
        %vm1059 = vcmp.ge.f32.partialorder %v1017, 0.0
        %v1060 = vsub.f32 0.0, %v1056
        %v1061 = vsub.f32 0.0, %v1057
        %v1062 = vsel %vm1058, %v1056, %v1060
        %v1063 = vsel %vm1059, %v1057, %v1061
        %v1064 = vadd.f32 %v1062, 1.0
        %v1065 = vadd.f32 %v1063, 1.0
        %v1066 = vmul.f32 %v1014, %v1064
        %v1067 = vmul.f32 %v1015, %v1065
        %vm1068 = vcmask 257024
        %1069 = vst.msk [vmem:[#allocation4] sm:$0xf] %vm1068, %v1066
        %1071 = vrot.lane.b32.xlu0 %v1066, 32
        %v1072 = vpop.permute.xlu0 %1071
        %vm1074 = vcmask 523524
        %1075 = vst.msk [vmem:[#allocation4 - $0x4] sm:$0xf0] %vm1074, %v1072
        %1077 = vrot.lane.b32.xlu0 %v1067, 64
        %v1078 = vpop.permute.xlu0 %1077
        %vm1080 = vcmask 781824
        %1081 = vst.msk [vmem:[#allocation4] sm:$0xf] %vm1080, %v1078
        %1082 = vrot.lane.b32.xlu0 %v1067, 96
        %v1083 = vpop.permute.xlu0 %1082
        %vm1085 = vcmask 1048324
        %1086 = vst.msk [vmem:[#allocation4 - $0x4] sm:$0xf0] %vm1085, %v1083
        %v1087 = vld [vmem:[%s452] sm:$0xff]
        %v1088 = vld [vmem:[%s452 + $0x8] sm:$0xff]
        %v1089 = vld [vmem:[#allocation4] sm:$0xf]
        %v1090 = vld [vmem:[%s457] sm:$0xff]
        %v1091 = vld [vmem:[%s457 + $0x8] sm:$0xff]
        %1093 = vset.pattern.permute.xlu0 0
        %1094 = vperm.xlu0 %1093, %v1090
        %v1095 = vpop.permute.xlu0 %1094
        %1098 = vset.pattern.permute.xlu0 0
        %1099 = vperm.xlu0 %1098, %v1091
        %v1100 = vpop.permute.xlu0 %1099
        %vm1102 = vcmask 31744
        %v1104 = vsel %vm1102, %v1087, 0
        %v1107 = vsel %vm1102, %v1088, 0
        %vm1109 = vcmask 1043456
        %v1111 = vsel %vm1109, %v1089, 0
        %1113 = vmatprep.subr.mxu0 0.0
        %1114 = vmatpush1.msra.mxu0 %v1111
        %1115 = vmatprep.subr.mxu0 0.0
        %1116 = vmatpush1.msra.mxu0 0.0
        %1117 = vmatprep.subr.mxu0 0.0
        %1118 = vmatpush1.msra.mxu0 0.0
        %1119 = vmatprep.subr.mxu0 0.0
        %1120 = vmatpush1.msra.mxu0 0.0
        %1121 = vmatprep.subr.mxu0 0.0
        %1122 = vmatpush1.msra.mxu0 0.0
        %1123 = vmatprep.subr.mxu0 0.0
        %1124 = vmatpush1.msra.mxu0 0.0
        %1125 = vmatprep.subr.mxu0 0.0
        %1126 = vmatpush1.msra.mxu0 0.0
        %1127 = vmatprep.subr.mxu0 0.0
        %1128 = vmatpush1.msra.mxu0 0.0
        %1129 = vmatprep.subr.mxu0 0.0
        %1130 = vmatpush1.msra.mxu0 0.0
        %1131 = vmatprep.subr.mxu0 0.0
        %1132 = vmatpush1.msra.mxu0 0.0
        %1133 = vmatprep.subr.mxu0 0.0
        %1134 = vmatpush1.msra.mxu0 0.0
        %1135 = vmatprep.subr.mxu0 0.0
        %1136 = vmatpush1.msra.mxu0 0.0
        %1137 = vmatprep.subr.mxu0 0.0
        %1138 = vmatpush1.msra.mxu0 0.0
        %1139 = vmatprep.subr.mxu0 0.0
        %1140 = vmatpush1.msra.mxu0 0.0
        %1141 = vmatprep.subr.mxu0 0.0
        %1142 = vmatpush1.msra.mxu0 0.0
        %1143 = vmatprep.subr.mxu0 0.0
        %1144 = vmatpush1.msra.mxu0 0.0
        %1145 = vmatprep.subr.mxu0 0.0
        %1146 = vmatpush1.msra.mxu0 0.0
        %1147 = vmatprep.subr.mxu0 0.0
        %1148 = vmatpush1.msra.mxu0 0.0
        %1149 = vmatprep.subr.mxu0 0.0
        %1150 = vmatpush1.msra.mxu0 0.0
        %1151 = vmatprep.subr.mxu0 0.0
        %1152 = vmatpush1.msra.mxu0 0.0
        %1153 = vmatprep.subr.mxu0 0.0
        %1154 = vmatpush1.msra.mxu0 0.0
        %1155 = vmatprep.subr.mxu0 0.0
        %1156 = vmatpush1.msra.mxu0 0.0
        %1157 = vmatprep.subr.mxu0 0.0
        %1158 = vmatpush1.msra.mxu0 0.0
        %1159 = vmatprep.subr.mxu0 0.0
        %1160 = vmatpush1.msra.mxu0 0.0
        %1161 = vmatprep.subr.mxu0 0.0
        %1162 = vmatpush1.msra.mxu0 0.0
        %1163 = vmatprep.subr.mxu0 0.0
        %1164 = vmatpush1.msra.mxu0 0.0
        %1165 = vmatprep.subr.mxu0 0.0
        %1166 = vmatpush1.msra.mxu0 0.0
        %1167 = vmatprep.subr.mxu0 0.0
        %1168 = vmatpush1.msra.mxu0 0.0
        %1169 = vmatprep.subr.mxu0 0.0
        %1170 = vmatpush1.msra.mxu0 0.0
        %1171 = vmatprep.subr.mxu0 0.0
        %1172 = vmatpush1.msra.mxu0 0.0
        %1173 = vmatprep.subr.mxu0 0.0
        %1174 = vmatpush1.msra.mxu0 0.0
        %1175 = vmatprep.subr.mxu0 0.0
        %1176 = vmatpush1.msra.mxu0 0.0
        %1177 = vmatprep.mubr.f32.mxu0 0.0
        %1178 = vmatmul.mubr.f32.gmra.mrb[0].mxu0 %v1104
        %v1179 = vpop.f32.mrb[0].mxu0
        %v1180 = vadd.f32 %v1095, %v1179
        %v1181 = vpop.f32.mrb[0].mxu0
        %1182 = vmatprep.mubr.f32.mxu0 0.0
        %1183 = vmatmul.mubr.f32.gmra.mrb[0].mxu0 %v1107
        %v1184 = vpop.f32.mrb[0].mxu0
        %v1185 = vadd.f32 %v1100, %v1184
        %v1186 = vpop.f32.mrb[0].mxu0
        %1187 = vdwg.mxu0
        %v1188 = vmul.f32 %v1180, 0.5
        %v1189 = vmul.f32 %v1185, 0.5
        %v1190 = vmul.f32 %v1180, %v545
        %v1191 = vmul.f32 %v1185, %v545
        %v1192 = vand.u32 2147483647, %v1190
        %v1193 = vand.u32 2147483647, %v1191
        %v1194 = vmul.f32 %v1192, 0.3275911
        %v1195 = vmul.f32 %v1193, 0.3275911
        %v1196 = vadd.f32 %v1194, 1.0
        %v1197 = vadd.f32 %v1195, 1.0
        %v1198 = vrcp.pop %v1196
        %v1199 = vmul.f32 1.0, %v1198
        %v1200 = vrcp.pop %v1197
        %v1201 = vmul.f32 1.0, %v1200
        %v1202 = vmul.f32 %v1199, 1.0614054
        %v1203 = vmul.f32 %v1201, 1.0614054
        %v1204 = vadd.f32 %v1202, -1.4531521
        %v1205 = vadd.f32 %v1203, -1.4531521
        %v1206 = vmul.f32 %v1199, %v1204
        %v1207 = vmul.f32 %v1201, %v1205
        %v1208 = vadd.f32 %v1206, 1.4214138
        %v1209 = vadd.f32 %v1207, 1.4214138
        %v1210 = vmul.f32 %v1199, %v1208
        %v1211 = vmul.f32 %v1201, %v1209
        %v1212 = vadd.f32 %v1210, -0.28449672
        %v1213 = vadd.f32 %v1211, -0.28449672
        %v1214 = vmul.f32 %v1199, %v1212
        %v1215 = vmul.f32 %v1201, %v1213
        %v1216 = vadd.f32 %v1214, 0.2548296
        %v1217 = vadd.f32 %v1215, 0.2548296
        %v1218 = vmul.f32 %v1199, %v1216
        %v1219 = vmul.f32 %v1201, %v1217
        %v1220 = vsub.f32 0.0, %v1192
        %v1221 = vsub.f32 0.0, %v1193
        %v1222 = vmul.f32 %v1220, %v1192
        %v1223 = vmul.f32 %v1221, %v1193
        %v1224 = vmul.f32 %v1222, 1.442695
        %v1225 = vpow.pop %v1224
        %v1226 = vmul.f32 %v1223, 1.442695
        %v1227 = vpow.pop %v1226
        %v1228 = vmul.f32 %v1218, %v1225
        %v1229 = vmul.f32 %v1219, %v1227
        %v1230 = vsub.f32 1.0, %v1228
        %v1231 = vsub.f32 1.0, %v1229
        %vm1232 = vcmp.ge.f32.partialorder %v1190, 0.0
        %vm1233 = vcmp.ge.f32.partialorder %v1191, 0.0
        %v1234 = vsub.f32 0.0, %v1230
        %v1235 = vsub.f32 0.0, %v1231
        %v1236 = vsel %vm1232, %v1230, %v1234
        %v1237 = vsel %vm1233, %v1231, %v1235
        %v1238 = vadd.f32 %v1236, 1.0
        %v1239 = vadd.f32 %v1237, 1.0
        %v1240 = vmul.f32 %v1188, %v1238
        %v1241 = vmul.f32 %v1189, %v1239
        %1242 = vst [vmem:[%s427] sm:$0xff] %v1240
        %1243 = vst [vmem:[%s427 + $0x8] sm:$0xff] %v1241
        %s1244 = sand.u32 %s272, 1
        %s1245 = scalar_lea.sflag [#allocation6], %s1244
        %s1246 = sand.u32 %s272, 1
        %s1247 = smul.addr %s1246, 16
        %s1248 = scalar_lea.vmem [#allocation5], %s1247
        // Predicated region
        $region61: #{tpu_custom_call.1} parent=59 // pred_check
          %p1249 = pneg %p282
        $region62: #{tpu_custom_call.1} parent=59 // pred_check_branch
          %1251 = sbr.rel (%p1249) target = $region64
        $region63: #{tpu_custom_call.1} parent=59 // pred_region
          %s1253 = ssub.s32 256, 256
          %1254 = vsyncadd %s1245, %s1253
          %s1255 = smul.addr %s24, 2
          %s1256 = smul.addr %s1255, 128
          %s1257 = scalar_lea.hbm %s10, %s1256
          %s1258 = sshll.u32 %s1248, 4
          %s1259 = int_to_ptr.vmem [resolvable:$true] %s1258
          %1264 = dma.vmem_to_hbm [thread:$0]  %s1259, 256, %s1257, %s1245, 128, 128, 8
        $region64: #{tpu_custom_call.1} parent=59 // pred_fallthru
          _
      $region60: #{tpu_custom_call.1} parent=5 // pred_fallthru
        _
      %p1265 = scmp.le.s32.totalorder 2, %s19
      // Predicated region
      $region65: #{tpu_custom_call.1} parent=5 // pred_check
        %p1266 = pneg %p1265
      $region66: #{tpu_custom_call.1} parent=5 // pred_check_branch
        %1268 = sbr.rel (%p1266) target = $region68
      $region67: #{tpu_custom_call.1} parent=5 // pred_region
        %s1269 = ssub.s32 %s19, 2
        // Predicated region
        $region69: #{tpu_custom_call.1} parent=67 // pred_check
          %p1270 = pneg %p288
        $region70: #{tpu_custom_call.1} parent=67 // pred_check_branch
          %1272 = sbr.rel (%p1270) target = $region72
        $region71: #{tpu_custom_call.1} parent=67 // pred_region
          %s1273 = sand.u32 %s273, 1
          %s1274 = scalar_lea.sflag [#allocation6], %s1273
          %s1275 = sand.u32 %s273, 1
          %s1276 = smul.addr %s1275, 16
          %s1277 = scalar_lea.vmem [#allocation5], %s1276
          %1278 = dma.done %s1274, 256
        $region72: #{tpu_custom_call.1} parent=67 // pred_fallthru
          _
      $region68: #{tpu_custom_call.1} parent=5 // pred_fallthru
        _
    $region6: #{tpu_custom_call.1} parent=1 // loop_footer
      %s23 = sadd.s32 1, %s19
    $region7: #{tpu_custom_call.1} parent=1 // loop_footer_branch
      %18 = sbr.rel target = $region3
    $region8: #{tpu_custom_call.1} parent=1 // loop_exit
      _
    %1279 = vsyncpa [#allocation6], 1
    %s1280 = scalar_lea.sflag [#allocation6], 1
    %1281 = vsyncpa %s1280, 1

</llo_original>
